<compile_context>
chip_gen: v7x
topology: tpu7x:2x2x1
jax: 0.10.0
libtpu: 0.0.40
codegen_flags: <defaults>
</compile_context>

<pallas_src>
import jax
import jax.numpy as jnp
from jax.experimental import pallas as pl
from jax.experimental.pallas import tpu as pltpu


# ----------------------------------------------------------------------------
# Small helpers
# ----------------------------------------------------------------------------
def _round_up(x, m):
    return ((x + m - 1) // m) * m


def _pad_last(x, target):
    pad = target - x.shape[-1]
    if pad == 0:
        return x
    return jnp.pad(x, [(0, 0)] * (x.ndim - 1) + [(0, pad)])


def _vmem_limit_bytes():
    """Generation-aware VMEM cap: ~3/4 of physical VMEM.

    ≈96 MiB on v5e/v6e (128 MiB physical), ≈48 MiB on v7x (64 MiB physical);
    falls back to 48 MiB (safe on every generation) if the query fails.
    """
    try:
        cap = int(pltpu.get_tpu_info().vmem_capacity_bytes)
    except Exception:
        cap = 64 * 1024 * 1024
    return min(cap * 3 // 4, 96 * 1024 * 1024)


# ----------------------------------------------------------------------------
# In-kernel building blocks (traced inline inside the fused kernel)
# ----------------------------------------------------------------------------
def _gcn_stack(h0, a_hat, ws_ref, bs_ref, L):
    """N x ReLU( (A_hat @ H) @ W + b ).

    `a_hat` is a per-sample list of (L,L) bf16 normalized adjacencies
    (block-diagonal structure), `h0` is the stacked (S*L, D) f32 activation so
    the H@W matmul runs with M = S*L (fills the 256-wide MXU when S=2).
    """
    S = len(a_hat)
    h = h0
    for l in range(ws_ref.shape[0]):                       # static unroll over layers
        h_bf = h.astype(jnp.bfloat16)
        ah = [jnp.dot(a_hat[s], h_bf[s * L:(s + 1) * L, :],
                      preferred_element_type=jnp.float32) for s in range(S)]
        ah = ah[0] if S == 1 else jnp.concatenate(ah, axis=0)     # (S*L, D) f32
        ahw = jnp.dot(ah.astype(jnp.bfloat16), ws_ref[l],
                      preferred_element_type=jnp.float32)
        h = jnp.maximum(ahw + bs_ref[l], 0.0)
    return h


def _head(h, w_ref, b_ref):
    """ReLU(H @ W + b) with a lane-dense (padded) output width."""
    y = jnp.dot(h.astype(jnp.bfloat16), w_ref[...],
                preferred_element_type=jnp.float32) + b_ref[...]
    return jnp.maximum(y, 0.0)


# ----------------------------------------------------------------------------
# Fused dual-channel kernel:
#   shared (shift + LayerNorm + mask)  ->  syn GCN stack (dep adjacency)
#                                      ->  sem GCN stack (attention adjacency)
#   -> Wsyn+ReLU / Wsem+ReLU heads, two outputs.
# ----------------------------------------------------------------------------
def _dual_channel_kernel(x_ref, mrow_ref, mcol_ref, adj_ref, g_ref, be_ref,
                         synw_ref, synb_ref, wq_ref, wk_ref, semw_ref, semb_ref,
                         wsyn_ref, bsyn_ref, wsem_ref, bsem_ref,
                         osyn_ref, osem_ref):
    S, L, D = x_ref.shape
    R = S * L

    # ---- shared prep: LayerNorm -> token shift (roll) -> source mask --------
    xs = x_ref[...].reshape(R, D)                                   # (R, D) f32
    mu = jnp.mean(xs, axis=-1, keepdims=True)
    var = jnp.mean(jnp.square(xs - mu), axis=-1, keepdims=True)
    y = (xs - mu) * jax.lax.rsqrt(var + 1e-5) * g_ref[...] + be_ref[...]
    # shifted[i] = y[i+1] (== torch: cat(LN(seq)[:,1:,:], zeros)).  Rolling the
    # stacked block wraps each sample's last row onto the next sample's row 0,
    # but m_col is 0 at position L-1 of every sample, so that row is zeroed —
    # exactly the appended zero row of the reference.
    y = pltpu.roll(y, shift=R - 1, axis=0)                          # XLU slot
    m_col = mcol_ref[...].reshape(R, 1)                             # (R, 1) f32
    h0 = y * m_col                                                  # masked inputs
    h0_bf = h0.astype(jnp.bfloat16)

    # ---- syntactic adjacency: A_hat = A / (deg(A) + 1), per sample ----------
    a_syn = []
    for s in range(S):
        a = adj_ref[s].astype(jnp.float32)                          # (L, L)
        inv = pl.reciprocal(jnp.sum(a, axis=-1, keepdims=True) + 1.0, approx=True)
        a_syn.append((a * inv).astype(jnp.bfloat16))

    # ---- semantic (attention) adjacency, never written to HBM ---------------
    # Wq is pre-scaled by 1/sqrt(dk) at init time.
    q = jnp.dot(h0_bf, wq_ref[...], preferred_element_type=jnp.float32)   # (R, Dk)
    k = jnp.dot(h0_bf, wk_ref[...], preferred_element_type=jnp.float32)
    a_sem = []
    for s in range(S):
        qs = q[s * L:(s + 1) * L].astype(jnp.bfloat16)
        ks = k[s * L:(s + 1) * L].astype(jnp.bfloat16)
        sc = jax.lax.dot_general(qs, ks, (((1,), (1,)), ((), ())),
                                 preferred_element_type=jnp.float32)      # (L, L)
        sc = sc + (mrow_ref[s] - 1.0) * 1e30                # additive key mask
        sc = sc - jnp.max(sc, axis=-1, keepdims=True)
        e = jnp.exp(sc)
        p = e / jnp.sum(e, axis=-1, keepdims=True)          # exact recip (parity)
        adj = p * mcol_ref[s]                               # zero padded query rows
        inv = pl.reciprocal(jnp.sum(adj, axis=-1, keepdims=True) + 1.0, approx=True)
        a_sem.append((adj * inv).astype(jnp.bfloat16))

    # ---- GCN stacks (H@W runs with M = S*L) ----------------------------------
    h_syn = _gcn_stack(h0, a_syn, synw_ref, synb_ref, L)
    h_sem = _gcn_stack(h0, a_sem, semw_ref, semb_ref, L)

    # ---- heads (lane-dense padded output width) ------------------------------
    osyn_ref[...] = _head(h_syn, wsyn_ref, bsyn_ref).reshape(osyn_ref.shape
                                                             ).astype(osyn_ref.dtype)
    osem_ref[...] = _head(h_sem, wsem_ref, bsem_ref).reshape(osem_ref.shape
                                                             ).astype(osem_ref.dtype)


# ----------------------------------------------------------------------------
# Wrapper: one pallas_call for both channels.
# ----------------------------------------------------------------------------
def dual_channel_gcn(sequence_output, dep_adj, src_mask, params):
    B, L, D = sequence_output.shape
    n_syn = params["syn_w"].shape[0]
    n_sem = params["sem_w"].shape[0]
    Dk = params["sem_wq"].shape[1]
    H = params["wsyn_w"].shape[1]
    Hp = _round_up(H, 128)                    # lane-dense head output

    # Two sequences per grid step fill the 256-wide MXU (v6e/v7x); keep the
    # grid extent >= 2 whenever possible so the batch still shards across
    # v7x's two TensorCores.  v5e (128-wide MXU) loses nothing.
    spp = 2 if (B % 2 == 0 and B >= 4) else 1
    grid = (B // spp,)

    # Effective mask after the token shift: position i (< L-1) of the shifted
    # sequence uses src_mask[:, i] (matches torch src_mask[:, :-1]); position
    # L-1 is the appended zero row.  Pass both row and column layouts.
    pos = jnp.arange(L)
    eff = jnp.where(pos[None, :] < L - 1, src_mask.astype(jnp.float32), 0.0)  # (B, L)
    m_row = eff[:, None, :]                                   # (B, 1, L)
    m_col = eff[:, :, None]                                   # (B, L, 1)
    adj_bf = dep_adj.astype(jnp.bfloat16)                     # 0/1 exact in bf16

    wsyn = _pad_last(params["wsyn_w"], Hp)
    bsyn = _pad_last(params["wsyn_b"], Hp)
    wsem = _pad_last(params["wsem_w"], Hp)
    bsem = _pad_last(params["wsem_b"], Hp)

    batch3 = lambda b: (b, 0, 0)
    const2 = lambda b: (0, 0)
    const3 = lambda b: (0, 0, 0)

    syn_full, sem_full = pl.pallas_call(
        _dual_channel_kernel,
        out_shape=(jax.ShapeDtypeStruct((B, L, Hp), jnp.float32),
                   jax.ShapeDtypeStruct((B, L, Hp), jnp.float32)),
        grid=grid,
        in_specs=[
            pl.BlockSpec((spp, L, D), batch3),        # sequence_output (f32)
            pl.BlockSpec((spp, 1, L), batch3),        # mask, row layout
            pl.BlockSpec((spp, L, 1), batch3),        # mask, column layout
            pl.BlockSpec((spp, L, L), batch3),        # dep adjacency (bf16)
            pl.BlockSpec((1, D), const2),             # LN gamma
            pl.BlockSpec((1, D), const2),             # LN beta
            pl.BlockSpec((n_syn, D, D), const3),      # syn GCN weights (bf16)
            pl.BlockSpec((n_syn, 1, D), const3),      # syn GCN biases  (f32)
            pl.BlockSpec((D, Dk), const2),            # Wq (bf16, pre-scaled 1/sqrt(dk))
            pl.BlockSpec((D, Dk), const2),            # Wk (bf16)
            pl.BlockSpec((n_sem, D, D), const3),      # sem GCN weights (bf16)
            pl.BlockSpec((n_sem, 1, D), const3),      # sem GCN biases  (f32)
            pl.BlockSpec((D, Hp), const2),            # Wsyn head (bf16, padded)
            pl.BlockSpec((1, Hp), const2),            # bsyn      (f32, padded)
            pl.BlockSpec((D, Hp), const2),            # Wsem head (bf16, padded)
            pl.BlockSpec((1, Hp), const2),            # bsem      (f32, padded)
        ],
        out_specs=(pl.BlockSpec((spp, L, Hp), batch3),
                   pl.BlockSpec((spp, L, Hp), batch3)),
        compiler_params=pltpu.CompilerParams(
            dimension_semantics=("parallel",),
            vmem_limit_bytes=_vmem_limit_bytes()),
    )(sequence_output, m_row, m_col, adj_bf,
      params["ln_gamma"], params["ln_beta"],
      params["syn_w"], params["syn_b"],
      params["sem_wq"], params["sem_wk"],
      params["sem_w"], params["sem_b"],
      wsyn, bsyn, wsem, bsem)

    return syn_full[:, :, :H], sem_full[:, :, :H]


# ----------------------------------------------------------------------------
# Forward pass (dropouts are identity in eval mode; pooled_output passes through)
# ----------------------------------------------------------------------------
@jax.jit
def dual_channel_encoder_forward(sequence_output, pooled_output, dep_adj,
                                 src_mask, params):
    syn_output, sem_output = dual_channel_gcn(sequence_output, dep_adj,
                                              src_mask, params)
    return syn_output, sem_output, pooled_output


def init_params(key, D, H, syn_layers, sem_layers):
    ks = jax.random.split(key, 6)
    scale = 0.1

    def lin(k, *shape):   # weights stored bf16 (MXU operands); biases/LN in f32
        return (scale * jax.random.normal(k, shape, jnp.float32)).astype(jnp.bfloat16)

    # Fold the attention 1/sqrt(dk) scale into Wq once (free at runtime).
    wq = scale * jax.random.normal(ks[2], (D, D), jnp.float32)
    wq = (wq * (1.0 / (D ** 0.5))).astype(jnp.bfloat16)

    return {
        "ln_gamma": jnp.ones((1, D), jnp.float32),
        "ln_beta": jnp.zeros((1, D), jnp.float32),
        "syn_w": lin(ks[0], syn_layers, D, D),
        "syn_b": jnp.zeros((syn_layers, 1, D), jnp.float32),
        "sem_w": lin(ks[1], sem_layers, D, D),
        "sem_b": jnp.zeros((sem_layers, 1, D), jnp.float32),
        "sem_wq": wq,
        "sem_wk": lin(ks[3], D, D),
        "wsyn_w": lin(ks[4], D, H),
        "wsyn_b": jnp.zeros((1, H), jnp.float32),
        "wsem_w": lin(ks[5], D, H),
        "wsem_b": jnp.zeros((1, H), jnp.float32),
    }


if __name__ == "__main__":
    key = jax.random.PRNGKey(0)
    B, L, D = 4, 16, 128        # batch, bert seq len, bert_dim (small, lane-aligned)
    H = D // 2                  # hidden_dim = bert_dim // 2
    syn_layers, sem_layers = 2, 2

    k_seq, k_pool, k_adj, k_par = jax.random.split(key, 4)

    sequence_output = jax.random.normal(k_seq, (B, L, D), jnp.float32)
    pooled_output = jax.random.normal(k_pool, (B, D), jnp.float32)
    dep_adj = (jax.random.uniform(k_adj, (B, L, L)) > 0.6).astype(jnp.float32)
    # valid tokens first, padding last
    src_mask = jnp.concatenate(
        [jnp.ones((B, L - 3), jnp.float32), jnp.zeros((B, 3), jnp.float32)],
        axis=1)

    params = init_params(k_par, D, H, syn_layers, sem_layers)

    syn_out, sem_out, pooled = dual_channel_encoder_forward(
        sequence_output, pooled_output, dep_adj, src_mask, params)

    jax.block_until_ready((syn_out, sem_out, pooled))
    assert syn_out.shape == (B, L, H)
    assert sem_out.shape == (B, L, H)
    assert pooled.shape == (B, D)
    assert bool(jnp.all(jnp.isfinite(syn_out)))
    assert bool(jnp.all(jnp.isfinite(sem_out)))
    print("KERNEL_OK")
</pallas_src>

<mosaic_0001>
module attributes {stable_mosaic.version = 11 : i64} {
  func.func @_dual_channel_kernel(%arg0: i32, %arg1: memref<2x16x128xf32, #tpu.memory_space<vmem>>, %arg2: memref<2x1x16xf32, #tpu.memory_space<vmem>>, %arg3: memref<2x16x1xf32, #tpu.memory_space<vmem>>, %arg4: memref<2x16x16xbf16, #tpu.memory_space<vmem>>, %arg5: memref<1x128xf32, #tpu.memory_space<vmem>>, %arg6: memref<1x128xf32, #tpu.memory_space<vmem>>, %arg7: memref<2x128x128xbf16, #tpu.memory_space<vmem>>, %arg8: memref<2x1x128xf32, #tpu.memory_space<vmem>>, %arg9: memref<128x128xbf16, #tpu.memory_space<vmem>>, %arg10: memref<128x128xbf16, #tpu.memory_space<vmem>>, %arg11: memref<2x128x128xbf16, #tpu.memory_space<vmem>>, %arg12: memref<2x1x128xf32, #tpu.memory_space<vmem>>, %arg13: memref<128x128xbf16, #tpu.memory_space<vmem>>, %arg14: memref<1x128xf32, #tpu.memory_space<vmem>>, %arg15: memref<128x128xbf16, #tpu.memory_space<vmem>>, %arg16: memref<1x128xf32, #tpu.memory_space<vmem>>, %arg17: memref<2x16x128xf32, #tpu.memory_space<vmem>>, %arg18: memref<2x16x128xf32, #tpu.memory_space<vmem>>) attributes {dimension_semantics = [#tpu.dimension_semantics<parallel>], iteration_bounds = array<i64: 2>, scalar_prefetch = 0 : i64, scratch_operands = 0 : i64, tpu.core_type = #tpu.core_type<tc>, window_params = [{transform_indices = @transform_0, window_bounds = array<i64: 2, 16, 128>}, {transform_indices = @transform_1, window_bounds = array<i64: 2, 1, 16>}, {transform_indices = @transform_2, window_bounds = array<i64: 2, 16, 1>}, {transform_indices = @transform_3, window_bounds = array<i64: 2, 16, 16>}, {pipeline_mode = #tpu.pipeline_mode<synchronous>, transform_indices = @transform_4, window_bounds = array<i64: 1, 128>}, {pipeline_mode = #tpu.pipeline_mode<synchronous>, transform_indices = @transform_5, window_bounds = array<i64: 1, 128>}, {pipeline_mode = #tpu.pipeline_mode<synchronous>, transform_indices = @transform_6, window_bounds = array<i64: 2, 128, 128>}, {pipeline_mode = #tpu.pipeline_mode<synchronous>, transform_indices = @transform_7, window_bounds = array<i64: 2, 1, 128>}, {pipeline_mode = #tpu.pipeline_mode<synchronous>, transform_indices = @transform_8, window_bounds = array<i64: 128, 128>}, {pipeline_mode = #tpu.pipeline_mode<synchronous>, transform_indices = @transform_9, window_bounds = array<i64: 128, 128>}, {pipeline_mode = #tpu.pipeline_mode<synchronous>, transform_indices = @transform_10, window_bounds = array<i64: 2, 128, 128>}, {pipeline_mode = #tpu.pipeline_mode<synchronous>, transform_indices = @transform_11, window_bounds = array<i64: 2, 1, 128>}, {pipeline_mode = #tpu.pipeline_mode<synchronous>, transform_indices = @transform_12, window_bounds = array<i64: 128, 128>}, {pipeline_mode = #tpu.pipeline_mode<synchronous>, transform_indices = @transform_13, window_bounds = array<i64: 1, 128>}, {pipeline_mode = #tpu.pipeline_mode<synchronous>, transform_indices = @transform_14, window_bounds = array<i64: 128, 128>}, {pipeline_mode = #tpu.pipeline_mode<synchronous>, transform_indices = @transform_15, window_bounds = array<i64: 1, 128>}, {transform_indices = @transform_16, window_bounds = array<i64: 2, 16, 128>}, {transform_indices = @transform_17, window_bounds = array<i64: 2, 16, 128>}]} {
    %c0 = arith.constant 0 : index
    %c0_0 = arith.constant 0 : index
    %c0_1 = arith.constant 0 : index
    %0 = vector.load %arg1[%c0, %c0_0, %c0_1] : memref<2x16x128xf32, #tpu.memory_space<vmem>>, vector<2x16x128xf32>
    %1 = vector.shape_cast %0 : vector<2x16x128xf32> to vector<32x128xf32>
    %cst = arith.constant dense<0.000000e+00> : vector<32xf32>
    %2 = vector.multi_reduction <add>, %1, %cst [1] : vector<32x128xf32> to vector<32xf32>
    %3 = vector.shape_cast %2 : vector<32xf32> to vector<32x1xf32>
    %cst_2 = arith.constant 1.280000e+02 : f32
    %4 = vector.broadcast %cst_2 : f32 to vector<32x1xf32>
    %5 = arith.divf %3, %4 : vector<32x1xf32>
    %6 = vector.broadcast %5 : vector<32x1xf32> to vector<32x128xf32>
    %7 = arith.subf %1, %6 : vector<32x128xf32>
    %8 = arith.mulf %7, %7 : vector<32x128xf32>
    %cst_3 = arith.constant dense<0.000000e+00> : vector<32xf32>
    %9 = vector.multi_reduction <add>, %8, %cst_3 [1] : vector<32x128xf32> to vector<32xf32>
    %10 = vector.shape_cast %9 : vector<32xf32> to vector<32x1xf32>
    %cst_4 = arith.constant 1.280000e+02 : f32
    %11 = vector.broadcast %cst_4 : f32 to vector<32x1xf32>
    %12 = arith.divf %10, %11 : vector<32x1xf32>
    %13 = vector.broadcast %5 : vector<32x1xf32> to vector<32x128xf32>
    %14 = arith.subf %1, %13 : vector<32x128xf32>
    %cst_5 = arith.constant 9.99999974E-6 : f32
    %15 = vector.broadcast %cst_5 : f32 to vector<32x1xf32>
    %16 = arith.addf %12, %15 : vector<32x1xf32>
    %17 = math.rsqrt %16 : vector<32x1xf32>
    %18 = vector.broadcast %17 : vector<32x1xf32> to vector<32x128xf32>
    %19 = arith.mulf %14, %18 : vector<32x128xf32>
    %c0_6 = arith.constant 0 : index
    %c0_7 = arith.constant 0 : index
    %20 = vector.load %arg5[%c0_6, %c0_7] : memref<1x128xf32, #tpu.memory_space<vmem>>, vector<1x128xf32>
    %21 = vector.broadcast %20 : vector<1x128xf32> to vector<32x128xf32>
    %22 = arith.mulf %19, %21 : vector<32x128xf32>
    %c0_8 = arith.constant 0 : index
    %c0_9 = arith.constant 0 : index
    %23 = vector.load %arg6[%c0_8, %c0_9] : memref<1x128xf32, #tpu.memory_space<vmem>>, vector<1x128xf32>
    %24 = vector.broadcast %23 : vector<1x128xf32> to vector<32x128xf32>
    %25 = arith.addf %22, %24 : vector<32x128xf32>
    %c31_i32 = arith.constant 31 : i32
    %26 = tpu.dynamic_rotate %25 by %c31_i32 dim 0 : vector<32x128xf32>, i32 -> vector<32x128xf32>
    %c0_10 = arith.constant 0 : index
    %c0_11 = arith.constant 0 : index
    %c0_12 = arith.constant 0 : index
    %27 = vector.load %arg3[%c0_10, %c0_11, %c0_12] : memref<2x16x1xf32, #tpu.memory_space<vmem>>, vector<2x16x1xf32>
    %28 = vector.shape_cast %27 : vector<2x16x1xf32> to vector<32x1xf32>
    %29 = vector.broadcast %28 : vector<32x1xf32> to vector<32x128xf32>
    %30 = arith.mulf %26, %29 : vector<32x128xf32>
    %31 = arith.truncf %30 : vector<32x128xf32> to vector<32x128xbf16>
    %c0_13 = arith.constant 0 : index
    %c0_14 = arith.constant 0 : index
    %c0_15 = arith.constant 0 : index
    %32 = vector.load %arg4[%c0_13, %c0_14, %c0_15] : memref<2x16x16xbf16, #tpu.memory_space<vmem>>, vector<1x16x16xbf16>
    %33 = vector.shape_cast %32 : vector<1x16x16xbf16> to vector<16x16xbf16>
    %34 = arith.extf %33 : vector<16x16xbf16> to vector<16x16xf32>
    %cst_16 = arith.constant dense<0.000000e+00> : vector<16xf32>
    %35 = vector.multi_reduction <add>, %34, %cst_16 [1] : vector<16x16xf32> to vector<16xf32>
    %36 = vector.shape_cast %35 : vector<16xf32> to vector<16x1xf32>
    %cst_17 = arith.constant 1.000000e+00 : f32
    %37 = vector.broadcast %cst_17 : f32 to vector<16x1xf32>
    %38 = arith.addf %36, %37 : vector<16x1xf32>
    %39 = tpu.reciprocal %38 {approx = true} : vector<16x1xf32> -> vector<16x1xf32>
    %40 = vector.broadcast %39 : vector<16x1xf32> to vector<16x16xf32>
    %41 = arith.mulf %34, %40 : vector<16x16xf32>
    %42 = arith.truncf %41 : vector<16x16xf32> to vector<16x16xbf16>
    %c1 = arith.constant 1 : index
    %c0_18 = arith.constant 0 : index
    %c0_19 = arith.constant 0 : index
    %43 = vector.load %arg4[%c1, %c0_18, %c0_19] : memref<2x16x16xbf16, #tpu.memory_space<vmem>>, vector<1x16x16xbf16>
    %44 = vector.shape_cast %43 : vector<1x16x16xbf16> to vector<16x16xbf16>
    %45 = arith.extf %44 : vector<16x16xbf16> to vector<16x16xf32>
    %cst_20 = arith.constant dense<0.000000e+00> : vector<16xf32>
    %46 = vector.multi_reduction <add>, %45, %cst_20 [1] : vector<16x16xf32> to vector<16xf32>
    %47 = vector.shape_cast %46 : vector<16xf32> to vector<16x1xf32>
    %cst_21 = arith.constant 1.000000e+00 : f32
    %48 = vector.broadcast %cst_21 : f32 to vector<16x1xf32>
    %49 = arith.addf %47, %48 : vector<16x1xf32>
    %50 = tpu.reciprocal %49 {approx = true} : vector<16x1xf32> -> vector<16x1xf32>
    %51 = vector.broadcast %50 : vector<16x1xf32> to vector<16x16xf32>
    %52 = arith.mulf %45, %51 : vector<16x16xf32>
    %53 = arith.truncf %52 : vector<16x16xf32> to vector<16x16xbf16>
    %c0_22 = arith.constant 0 : index
    %c0_23 = arith.constant 0 : index
    %54 = vector.load %arg9[%c0_22, %c0_23] : memref<128x128xbf16, #tpu.memory_space<vmem>>, vector<128x128xbf16>
    %cst_24 = arith.constant dense<0.000000e+00> : vector<32x128xf32>
    %55 = tpu.matmul %31, %54, %cst_24 {dimension_numbers = #tpu.dot_dimension_numbers<[1], [0], [0], [1], [0, 0, 1, 1], [], []>} : vector<32x128xbf16>, vector<128x128xbf16>, vector<32x128xf32> -> vector<32x128xf32>
    %c0_25 = arith.constant 0 : index
    %c0_26 = arith.constant 0 : index
    %56 = vector.load %arg10[%c0_25, %c0_26] : memref<128x128xbf16, #tpu.memory_space<vmem>>, vector<128x128xbf16>
    %cst_27 = arith.constant dense<0.000000e+00> : vector<32x128xf32>
    %57 = tpu.matmul %31, %56, %cst_27 {dimension_numbers = #tpu.dot_dimension_numbers<[1], [0], [0], [1], [0, 0, 1, 1], [], []>} : vector<32x128xbf16>, vector<128x128xbf16>, vector<32x128xf32> -> vector<32x128xf32>
    %58 = vector.extract_strided_slice %55 {offsets = [0, 0], sizes = [16, 128], strides = [1, 1]} : vector<32x128xf32> to vector<16x128xf32>
    %59 = arith.truncf %58 : vector<16x128xf32> to vector<16x128xbf16>
    %60 = vector.extract_strided_slice %57 {offsets = [0, 0], sizes = [16, 128], strides = [1, 1]} : vector<32x128xf32> to vector<16x128xf32>
    %61 = arith.truncf %60 : vector<16x128xf32> to vector<16x128xbf16>
    %cst_28 = arith.constant dense<0.000000e+00> : vector<16x16xf32>
    %62 = tpu.matmul %59, %61, %cst_28 {dimension_numbers = #tpu.dot_dimension_numbers<[1], [1], [0], [0], [0, 0, 1, 0], [], []>} : vector<16x128xbf16>, vector<16x128xbf16>, vector<16x16xf32> -> vector<16x16xf32>
    %c0_29 = arith.constant 0 : index
    %c0_30 = arith.constant 0 : index
    %c0_31 = arith.constant 0 : index
    %63 = vector.load %arg2[%c0_29, %c0_30, %c0_31] : memref<2x1x16xf32, #tpu.memory_space<vmem>>, vector<1x1x16xf32>
    %64 = vector.shape_cast %63 : vector<1x1x16xf32> to vector<1x16xf32>
    %cst_32 = arith.constant 1.000000e+00 : f32
    %65 = vector.broadcast %cst_32 : f32 to vector<1x16xf32>
    %66 = arith.subf %64, %65 : vector<1x16xf32>
    %cst_33 = arith.constant 1.000000e+30 : f32
    %67 = vector.broadcast %cst_33 : f32 to vector<1x16xf32>
    %68 = arith.mulf %66, %67 : vector<1x16xf32>
    %69 = vector.broadcast %68 : vector<1x16xf32> to vector<16x16xf32>
    %70 = arith.addf %62, %69 : vector<16x16xf32>
    %cst_34 = arith.constant dense<0xFF800000> : vector<16xf32>
    %71 = vector.multi_reduction <maximumf>, %70, %cst_34 [1] : vector<16x16xf32> to vector<16xf32>
    %72 = vector.shape_cast %71 : vector<16xf32> to vector<16x1xf32>
    %73 = vector.broadcast %72 : vector<16x1xf32> to vector<16x16xf32>
    %74 = arith.subf %70, %73 : vector<16x16xf32>
    %75 = math.exp %74 : vector<16x16xf32>
    %cst_35 = arith.constant dense<0.000000e+00> : vector<16xf32>
    %76 = vector.multi_reduction <add>, %75, %cst_35 [1] : vector<16x16xf32> to vector<16xf32>
    %77 = vector.shape_cast %76 : vector<16xf32> to vector<16x1xf32>
    %78 = vector.broadcast %77 : vector<16x1xf32> to vector<16x16xf32>
    %79 = arith.divf %75, %78 : vector<16x16xf32>
    %c0_36 = arith.constant 0 : index
    %c0_37 = arith.constant 0 : index
    %c0_38 = arith.constant 0 : index
    %80 = vector.load %arg3[%c0_36, %c0_37, %c0_38] : memref<2x16x1xf32, #tpu.memory_space<vmem>>, vector<1x16x1xf32>
    %81 = vector.shape_cast %80 : vector<1x16x1xf32> to vector<16x1xf32>
    %82 = vector.broadcast %81 : vector<16x1xf32> to vector<16x16xf32>
    %83 = arith.mulf %79, %82 : vector<16x16xf32>
    %cst_39 = arith.constant dense<0.000000e+00> : vector<16xf32>
    %84 = vector.multi_reduction <add>, %83, %cst_39 [1] : vector<16x16xf32> to vector<16xf32>
    %85 = vector.shape_cast %84 : vector<16xf32> to vector<16x1xf32>
    %cst_40 = arith.constant 1.000000e+00 : f32
    %86 = vector.broadcast %cst_40 : f32 to vector<16x1xf32>
    %87 = arith.addf %85, %86 : vector<16x1xf32>
    %88 = tpu.reciprocal %87 {approx = true} : vector<16x1xf32> -> vector<16x1xf32>
    %89 = vector.broadcast %88 : vector<16x1xf32> to vector<16x16xf32>
    %90 = arith.mulf %83, %89 : vector<16x16xf32>
    %91 = arith.truncf %90 : vector<16x16xf32> to vector<16x16xbf16>
    %92 = vector.extract_strided_slice %55 {offsets = [16, 0], sizes = [16, 128], strides = [1, 1]} : vector<32x128xf32> to vector<16x128xf32>
    %93 = arith.truncf %92 : vector<16x128xf32> to vector<16x128xbf16>
    %94 = vector.extract_strided_slice %57 {offsets = [16, 0], sizes = [16, 128], strides = [1, 1]} : vector<32x128xf32> to vector<16x128xf32>
    %95 = arith.truncf %94 : vector<16x128xf32> to vector<16x128xbf16>
    %cst_41 = arith.constant dense<0.000000e+00> : vector<16x16xf32>
    %96 = tpu.matmul %93, %95, %cst_41 {dimension_numbers = #tpu.dot_dimension_numbers<[1], [1], [0], [0], [0, 0, 1, 0], [], []>} : vector<16x128xbf16>, vector<16x128xbf16>, vector<16x16xf32> -> vector<16x16xf32>
    %c1_42 = arith.constant 1 : index
    %c0_43 = arith.constant 0 : index
    %c0_44 = arith.constant 0 : index
    %97 = vector.load %arg2[%c1_42, %c0_43, %c0_44] : memref<2x1x16xf32, #tpu.memory_space<vmem>>, vector<1x1x16xf32>
    %98 = vector.shape_cast %97 : vector<1x1x16xf32> to vector<1x16xf32>
    %cst_45 = arith.constant 1.000000e+00 : f32
    %99 = vector.broadcast %cst_45 : f32 to vector<1x16xf32>
    %100 = arith.subf %98, %99 : vector<1x16xf32>
    %cst_46 = arith.constant 1.000000e+30 : f32
    %101 = vector.broadcast %cst_46 : f32 to vector<1x16xf32>
    %102 = arith.mulf %100, %101 : vector<1x16xf32>
    %103 = vector.broadcast %102 : vector<1x16xf32> to vector<16x16xf32>
    %104 = arith.addf %96, %103 : vector<16x16xf32>
    %cst_47 = arith.constant dense<0xFF800000> : vector<16xf32>
    %105 = vector.multi_reduction <maximumf>, %104, %cst_47 [1] : vector<16x16xf32> to vector<16xf32>
    %106 = vector.shape_cast %105 : vector<16xf32> to vector<16x1xf32>
    %107 = vector.broadcast %106 : vector<16x1xf32> to vector<16x16xf32>
    %108 = arith.subf %104, %107 : vector<16x16xf32>
    %109 = math.exp %108 : vector<16x16xf32>
    %cst_48 = arith.constant dense<0.000000e+00> : vector<16xf32>
    %110 = vector.multi_reduction <add>, %109, %cst_48 [1] : vector<16x16xf32> to vector<16xf32>
    %111 = vector.shape_cast %110 : vector<16xf32> to vector<16x1xf32>
    %112 = vector.broadcast %111 : vector<16x1xf32> to vector<16x16xf32>
    %113 = arith.divf %109, %112 : vector<16x16xf32>
    %c1_49 = arith.constant 1 : index
    %c0_50 = arith.constant 0 : index
    %c0_51 = arith.constant 0 : index
    %114 = vector.load %arg3[%c1_49, %c0_50, %c0_51] : memref<2x16x1xf32, #tpu.memory_space<vmem>>, vector<1x16x1xf32>
    %115 = vector.shape_cast %114 : vector<1x16x1xf32> to vector<16x1xf32>
    %116 = vector.broadcast %115 : vector<16x1xf32> to vector<16x16xf32>
    %117 = arith.mulf %113, %116 : vector<16x16xf32>
    %cst_52 = arith.constant dense<0.000000e+00> : vector<16xf32>
    %118 = vector.multi_reduction <add>, %117, %cst_52 [1] : vector<16x16xf32> to vector<16xf32>
    %119 = vector.shape_cast %118 : vector<16xf32> to vector<16x1xf32>
    %cst_53 = arith.constant 1.000000e+00 : f32
    %120 = vector.broadcast %cst_53 : f32 to vector<16x1xf32>
    %121 = arith.addf %119, %120 : vector<16x1xf32>
    %122 = tpu.reciprocal %121 {approx = true} : vector<16x1xf32> -> vector<16x1xf32>
    %123 = vector.broadcast %122 : vector<16x1xf32> to vector<16x16xf32>
    %124 = arith.mulf %117, %123 : vector<16x16xf32>
    %125 = arith.truncf %124 : vector<16x16xf32> to vector<16x16xbf16>
    %126 = arith.truncf %30 : vector<32x128xf32> to vector<32x128xbf16>
    %127 = vector.extract_strided_slice %126 {offsets = [0, 0], sizes = [16, 128], strides = [1, 1]} : vector<32x128xbf16> to vector<16x128xbf16>
    %cst_54 = arith.constant dense<0.000000e+00> : vector<16x128xf32>
    %128 = tpu.matmul %42, %127, %cst_54 {dimension_numbers = #tpu.dot_dimension_numbers<[1], [0], [0], [1], [0, 0, 1, 1], [], []>} : vector<16x16xbf16>, vector<16x128xbf16>, vector<16x128xf32> -> vector<16x128xf32>
    %129 = vector.extract_strided_slice %126 {offsets = [16, 0], sizes = [16, 128], strides = [1, 1]} : vector<32x128xbf16> to vector<16x128xbf16>
    %cst_55 = arith.constant dense<0.000000e+00> : vector<16x128xf32>
    %130 = tpu.matmul %53, %129, %cst_55 {dimension_numbers = #tpu.dot_dimension_numbers<[1], [0], [0], [1], [0, 0, 1, 1], [], []>} : vector<16x16xbf16>, vector<16x128xbf16>, vector<16x128xf32> -> vector<16x128xf32>
    %131 = tpu.concatenate %128, %130 in 0 : vector<16x128xf32>, vector<16x128xf32> -> vector<32x128xf32>
    %132 = arith.truncf %131 : vector<32x128xf32> to vector<32x128xbf16>
    %c0_56 = arith.constant 0 : index
    %c0_57 = arith.constant 0 : index
    %c0_58 = arith.constant 0 : index
    %133 = vector.load %arg7[%c0_56, %c0_57, %c0_58] : memref<2x128x128xbf16, #tpu.memory_space<vmem>>, vector<1x128x128xbf16>
    %134 = vector.shape_cast %133 : vector<1x128x128xbf16> to vector<128x128xbf16>
    %cst_59 = arith.constant dense<0.000000e+00> : vector<32x128xf32>
    %135 = tpu.matmul %132, %134, %cst_59 {dimension_numbers = #tpu.dot_dimension_numbers<[1], [0], [0], [1], [0, 0, 1, 1], [], []>} : vector<32x128xbf16>, vector<128x128xbf16>, vector<32x128xf32> -> vector<32x128xf32>
    %c0_60 = arith.constant 0 : index
    %c0_61 = arith.constant 0 : index
    %c0_62 = arith.constant 0 : index
    %136 = vector.load %arg8[%c0_60, %c0_61, %c0_62] : memref<2x1x128xf32, #tpu.memory_space<vmem>>, vector<1x1x128xf32>
    %137 = vector.shape_cast %136 : vector<1x1x128xf32> to vector<1x128xf32>
    %138 = vector.broadcast %137 : vector<1x128xf32> to vector<32x128xf32>
    %139 = arith.addf %135, %138 : vector<32x128xf32>
    %cst_63 = arith.constant 0.000000e+00 : f32
    %140 = vector.broadcast %cst_63 : f32 to vector<32x128xf32>
    %141 = arith.maximumf %139, %140 : vector<32x128xf32>
    %142 = arith.truncf %141 : vector<32x128xf32> to vector<32x128xbf16>
    %143 = vector.extract_strided_slice %142 {offsets = [0, 0], sizes = [16, 128], strides = [1, 1]} : vector<32x128xbf16> to vector<16x128xbf16>
    %cst_64 = arith.constant dense<0.000000e+00> : vector<16x128xf32>
    %144 = tpu.matmul %42, %143, %cst_64 {dimension_numbers = #tpu.dot_dimension_numbers<[1], [0], [0], [1], [0, 0, 1, 1], [], []>} : vector<16x16xbf16>, vector<16x128xbf16>, vector<16x128xf32> -> vector<16x128xf32>
    %145 = vector.extract_strided_slice %142 {offsets = [16, 0], sizes = [16, 128], strides = [1, 1]} : vector<32x128xbf16> to vector<16x128xbf16>
    %cst_65 = arith.constant dense<0.000000e+00> : vector<16x128xf32>
    %146 = tpu.matmul %53, %145, %cst_65 {dimension_numbers = #tpu.dot_dimension_numbers<[1], [0], [0], [1], [0, 0, 1, 1], [], []>} : vector<16x16xbf16>, vector<16x128xbf16>, vector<16x128xf32> -> vector<16x128xf32>
    %147 = tpu.concatenate %144, %146 in 0 : vector<16x128xf32>, vector<16x128xf32> -> vector<32x128xf32>
    %148 = arith.truncf %147 : vector<32x128xf32> to vector<32x128xbf16>
    %c1_66 = arith.constant 1 : index
    %c0_67 = arith.constant 0 : index
    %c0_68 = arith.constant 0 : index
    %149 = vector.load %arg7[%c1_66, %c0_67, %c0_68] : memref<2x128x128xbf16, #tpu.memory_space<vmem>>, vector<1x128x128xbf16>
    %150 = vector.shape_cast %149 : vector<1x128x128xbf16> to vector<128x128xbf16>
    %cst_69 = arith.constant dense<0.000000e+00> : vector<32x128xf32>
    %151 = tpu.matmul %148, %150, %cst_69 {dimension_numbers = #tpu.dot_dimension_numbers<[1], [0], [0], [1], [0, 0, 1, 1], [], []>} : vector<32x128xbf16>, vector<128x128xbf16>, vector<32x128xf32> -> vector<32x128xf32>
    %c1_70 = arith.constant 1 : index
    %c0_71 = arith.constant 0 : index
    %c0_72 = arith.constant 0 : index
    %152 = vector.load %arg8[%c1_70, %c0_71, %c0_72] : memref<2x1x128xf32, #tpu.memory_space<vmem>>, vector<1x1x128xf32>
    %153 = vector.shape_cast %152 : vector<1x1x128xf32> to vector<1x128xf32>
    %154 = vector.broadcast %153 : vector<1x128xf32> to vector<32x128xf32>
    %155 = arith.addf %151, %154 : vector<32x128xf32>
    %cst_73 = arith.constant 0.000000e+00 : f32
    %156 = vector.broadcast %cst_73 : f32 to vector<32x128xf32>
    %157 = arith.maximumf %155, %156 : vector<32x128xf32>
    %158 = arith.truncf %30 : vector<32x128xf32> to vector<32x128xbf16>
    %159 = vector.extract_strided_slice %158 {offsets = [0, 0], sizes = [16, 128], strides = [1, 1]} : vector<32x128xbf16> to vector<16x128xbf16>
    %cst_74 = arith.constant dense<0.000000e+00> : vector<16x128xf32>
    %160 = tpu.matmul %91, %159, %cst_74 {dimension_numbers = #tpu.dot_dimension_numbers<[1], [0], [0], [1], [0, 0, 1, 1], [], []>} : vector<16x16xbf16>, vector<16x128xbf16>, vector<16x128xf32> -> vector<16x128xf32>
    %161 = vector.extract_strided_slice %158 {offsets = [16, 0], sizes = [16, 128], strides = [1, 1]} : vector<32x128xbf16> to vector<16x128xbf16>
    %cst_75 = arith.constant dense<0.000000e+00> : vector<16x128xf32>
    %162 = tpu.matmul %125, %161, %cst_75 {dimension_numbers = #tpu.dot_dimension_numbers<[1], [0], [0], [1], [0, 0, 1, 1], [], []>} : vector<16x16xbf16>, vector<16x128xbf16>, vector<16x128xf32> -> vector<16x128xf32>
    %163 = tpu.concatenate %160, %162 in 0 : vector<16x128xf32>, vector<16x128xf32> -> vector<32x128xf32>
    %164 = arith.truncf %163 : vector<32x128xf32> to vector<32x128xbf16>
    %c0_76 = arith.constant 0 : index
    %c0_77 = arith.constant 0 : index
    %c0_78 = arith.constant 0 : index
    %165 = vector.load %arg11[%c0_76, %c0_77, %c0_78] : memref<2x128x128xbf16, #tpu.memory_space<vmem>>, vector<1x128x128xbf16>
    %166 = vector.shape_cast %165 : vector<1x128x128xbf16> to vector<128x128xbf16>
    %cst_79 = arith.constant dense<0.000000e+00> : vector<32x128xf32>
    %167 = tpu.matmul %164, %166, %cst_79 {dimension_numbers = #tpu.dot_dimension_numbers<[1], [0], [0], [1], [0, 0, 1, 1], [], []>} : vector<32x128xbf16>, vector<128x128xbf16>, vector<32x128xf32> -> vector<32x128xf32>
    %c0_80 = arith.constant 0 : index
    %c0_81 = arith.constant 0 : index
    %c0_82 = arith.constant 0 : index
    %168 = vector.load %arg12[%c0_80, %c0_81, %c0_82] : memref<2x1x128xf32, #tpu.memory_space<vmem>>, vector<1x1x128xf32>
    %169 = vector.shape_cast %168 : vector<1x1x128xf32> to vector<1x128xf32>
    %170 = vector.broadcast %169 : vector<1x128xf32> to vector<32x128xf32>
    %171 = arith.addf %167, %170 : vector<32x128xf32>
    %cst_83 = arith.constant 0.000000e+00 : f32
    %172 = vector.broadcast %cst_83 : f32 to vector<32x128xf32>
    %173 = arith.maximumf %171, %172 : vector<32x128xf32>
    %174 = arith.truncf %173 : vector<32x128xf32> to vector<32x128xbf16>
    %175 = vector.extract_strided_slice %174 {offsets = [0, 0], sizes = [16, 128], strides = [1, 1]} : vector<32x128xbf16> to vector<16x128xbf16>
    %cst_84 = arith.constant dense<0.000000e+00> : vector<16x128xf32>
    %176 = tpu.matmul %91, %175, %cst_84 {dimension_numbers = #tpu.dot_dimension_numbers<[1], [0], [0], [1], [0, 0, 1, 1], [], []>} : vector<16x16xbf16>, vector<16x128xbf16>, vector<16x128xf32> -> vector<16x128xf32>
    %177 = vector.extract_strided_slice %174 {offsets = [16, 0], sizes = [16, 128], strides = [1, 1]} : vector<32x128xbf16> to vector<16x128xbf16>
    %cst_85 = arith.constant dense<0.000000e+00> : vector<16x128xf32>
    %178 = tpu.matmul %125, %177, %cst_85 {dimension_numbers = #tpu.dot_dimension_numbers<[1], [0], [0], [1], [0, 0, 1, 1], [], []>} : vector<16x16xbf16>, vector<16x128xbf16>, vector<16x128xf32> -> vector<16x128xf32>
    %179 = tpu.concatenate %176, %178 in 0 : vector<16x128xf32>, vector<16x128xf32> -> vector<32x128xf32>
    %180 = arith.truncf %179 : vector<32x128xf32> to vector<32x128xbf16>
    %c1_86 = arith.constant 1 : index
    %c0_87 = arith.constant 0 : index
    %c0_88 = arith.constant 0 : index
    %181 = vector.load %arg11[%c1_86, %c0_87, %c0_88] : memref<2x128x128xbf16, #tpu.memory_space<vmem>>, vector<1x128x128xbf16>
    %182 = vector.shape_cast %181 : vector<1x128x128xbf16> to vector<128x128xbf16>
    %cst_89 = arith.constant dense<0.000000e+00> : vector<32x128xf32>
    %183 = tpu.matmul %180, %182, %cst_89 {dimension_numbers = #tpu.dot_dimension_numbers<[1], [0], [0], [1], [0, 0, 1, 1], [], []>} : vector<32x128xbf16>, vector<128x128xbf16>, vector<32x128xf32> -> vector<32x128xf32>
    %c1_90 = arith.constant 1 : index
    %c0_91 = arith.constant 0 : index
    %c0_92 = arith.constant 0 : index
    %184 = vector.load %arg12[%c1_90, %c0_91, %c0_92] : memref<2x1x128xf32, #tpu.memory_space<vmem>>, vector<1x1x128xf32>
    %185 = vector.shape_cast %184 : vector<1x1x128xf32> to vector<1x128xf32>
    %186 = vector.broadcast %185 : vector<1x128xf32> to vector<32x128xf32>
    %187 = arith.addf %183, %186 : vector<32x128xf32>
    %cst_93 = arith.constant 0.000000e+00 : f32
    %188 = vector.broadcast %cst_93 : f32 to vector<32x128xf32>
    %189 = arith.maximumf %187, %188 : vector<32x128xf32>
    %190 = arith.truncf %157 : vector<32x128xf32> to vector<32x128xbf16>
    %c0_94 = arith.constant 0 : index
    %c0_95 = arith.constant 0 : index
    %191 = vector.load %arg13[%c0_94, %c0_95] : memref<128x128xbf16, #tpu.memory_space<vmem>>, vector<128x128xbf16>
    %cst_96 = arith.constant dense<0.000000e+00> : vector<32x128xf32>
    %192 = tpu.matmul %190, %191, %cst_96 {dimension_numbers = #tpu.dot_dimension_numbers<[1], [0], [0], [1], [0, 0, 1, 1], [], []>} : vector<32x128xbf16>, vector<128x128xbf16>, vector<32x128xf32> -> vector<32x128xf32>
    %c0_97 = arith.constant 0 : index
    %c0_98 = arith.constant 0 : index
    %193 = vector.load %arg14[%c0_97, %c0_98] : memref<1x128xf32, #tpu.memory_space<vmem>>, vector<1x128xf32>
    %194 = vector.broadcast %193 : vector<1x128xf32> to vector<32x128xf32>
    %195 = arith.addf %192, %194 : vector<32x128xf32>
    %cst_99 = arith.constant 0.000000e+00 : f32
    %196 = vector.broadcast %cst_99 : f32 to vector<32x128xf32>
    %197 = arith.maximumf %195, %196 : vector<32x128xf32>
    %198 = vector.shape_cast %197 : vector<32x128xf32> to vector<2x16x128xf32>
    %c0_100 = arith.constant 0 : index
    %c0_101 = arith.constant 0 : index
    %c0_102 = arith.constant 0 : index
    %199 = vector.load %arg17[%c0_100, %c0_101, %c0_102] : memref<2x16x128xf32, #tpu.memory_space<vmem>>, vector<2x16x128xf32>
    tpu.vector_store %arg17[%c0_100, %c0_101, %c0_102], %198 {strides = array<i32>} : memref<2x16x128xf32, #tpu.memory_space<vmem>>, vector<2x16x128xf32>,
    %200 = arith.truncf %189 : vector<32x128xf32> to vector<32x128xbf16>
    %c0_103 = arith.constant 0 : index
    %c0_104 = arith.constant 0 : index
    %201 = vector.load %arg15[%c0_103, %c0_104] : memref<128x128xbf16, #tpu.memory_space<vmem>>, vector<128x128xbf16>
    %cst_105 = arith.constant dense<0.000000e+00> : vector<32x128xf32>
    %202 = tpu.matmul %200, %201, %cst_105 {dimension_numbers = #tpu.dot_dimension_numbers<[1], [0], [0], [1], [0, 0, 1, 1], [], []>} : vector<32x128xbf16>, vector<128x128xbf16>, vector<32x128xf32> -> vector<32x128xf32>
    %c0_106 = arith.constant 0 : index
    %c0_107 = arith.constant 0 : index
    %203 = vector.load %arg16[%c0_106, %c0_107] : memref<1x128xf32, #tpu.memory_space<vmem>>, vector<1x128xf32>
    %204 = vector.broadcast %203 : vector<1x128xf32> to vector<32x128xf32>
    %205 = arith.addf %202, %204 : vector<32x128xf32>
    %cst_108 = arith.constant 0.000000e+00 : f32
    %206 = vector.broadcast %cst_108 : f32 to vector<32x128xf32>
    %207 = arith.maximumf %205, %206 : vector<32x128xf32>
    %208 = vector.shape_cast %207 : vector<32x128xf32> to vector<2x16x128xf32>
    %c0_109 = arith.constant 0 : index
    %c0_110 = arith.constant 0 : index
    %c0_111 = arith.constant 0 : index
    %209 = vector.load %arg18[%c0_109, %c0_110, %c0_111] : memref<2x16x128xf32, #tpu.memory_space<vmem>>, vector<2x16x128xf32>
    tpu.vector_store %arg18[%c0_109, %c0_110, %c0_111], %208 {strides = array<i32>} : memref<2x16x128xf32, #tpu.memory_space<vmem>>, vector<2x16x128xf32>,
    return
  }
  func.func @transform_0(%arg0: i32) -> (i32, i32, i32) {
    %c0_i32 = arith.constant 0 : i32
    %c0_i32_0 = arith.constant 0 : i32
    %c0_i32_1 = arith.constant 0 : i32
    return %arg0, %c0_i32, %c0_i32_0 : i32, i32, i32
  }
  func.func @transform_1(%arg0: i32) -> (i32, i32, i32) {
    %c0_i32 = arith.constant 0 : i32
    %c0_i32_0 = arith.constant 0 : i32
    %c0_i32_1 = arith.constant 0 : i32
    return %arg0, %c0_i32, %c0_i32_0 : i32, i32, i32
  }
  func.func @transform_2(%arg0: i32) -> (i32, i32, i32) {
    %c0_i32 = arith.constant 0 : i32
    %c0_i32_0 = arith.constant 0 : i32
    %c0_i32_1 = arith.constant 0 : i32
    return %arg0, %c0_i32, %c0_i32_0 : i32, i32, i32
  }
  func.func @transform_3(%arg0: i32) -> (i32, i32, i32) {
    %c0_i32 = arith.constant 0 : i32
    %c0_i32_0 = arith.constant 0 : i32
    %c0_i32_1 = arith.constant 0 : i32
    return %arg0, %c0_i32, %c0_i32_0 : i32, i32, i32
  }
  func.func @transform_4(%arg0: i32) -> (i32, i32) {
    %c0_i32 = arith.constant 0 : i32
    %c0_i32_0 = arith.constant 0 : i32
    %c0_i32_1 = arith.constant 0 : i32
    return %c0_i32, %c0_i32_0 : i32, i32
  }
  func.func @transform_5(%arg0: i32) -> (i32, i32) {
    %c0_i32 = arith.constant 0 : i32
    %c0_i32_0 = arith.constant 0 : i32
    %c0_i32_1 = arith.constant 0 : i32
    return %c0_i32, %c0_i32_0 : i32, i32
  }
  func.func @transform_6(%arg0: i32) -> (i32, i32, i32) {
    %c0_i32 = arith.constant 0 : i32
    %c0_i32_0 = arith.constant 0 : i32
    %c0_i32_1 = arith.constant 0 : i32
    %c0_i32_2 = arith.constant 0 : i32
    return %c0_i32, %c0_i32_0, %c0_i32_1 : i32, i32, i32
  }
  func.func @transform_7(%arg0: i32) -> (i32, i32, i32) {
    %c0_i32 = arith.constant 0 : i32
    %c0_i32_0 = arith.constant 0 : i32
    %c0_i32_1 = arith.constant 0 : i32
    %c0_i32_2 = arith.constant 0 : i32
    return %c0_i32, %c0_i32_0, %c0_i32_1 : i32, i32, i32
  }
  func.func @transform_8(%arg0: i32) -> (i32, i32) {
    %c0_i32 = arith.constant 0 : i32
    %c0_i32_0 = arith.constant 0 : i32
    %c0_i32_1 = arith.constant 0 : i32
    return %c0_i32, %c0_i32_0 : i32, i32
  }
  func.func @transform_9(%arg0: i32) -> (i32, i32) {
    %c0_i32 = arith.constant 0 : i32
    %c0_i32_0 = arith.constant 0 : i32
    %c0_i32_1 = arith.constant 0 : i32
    return %c0_i32, %c0_i32_0 : i32, i32
  }
  func.func @transform_10(%arg0: i32) -> (i32, i32, i32) {
    %c0_i32 = arith.constant 0 : i32
    %c0_i32_0 = arith.constant 0 : i32
    %c0_i32_1 = arith.constant 0 : i32
    %c0_i32_2 = arith.constant 0 : i32
    return %c0_i32, %c0_i32_0, %c0_i32_1 : i32, i32, i32
  }
  func.func @transform_11(%arg0: i32) -> (i32, i32, i32) {
    %c0_i32 = arith.constant 0 : i32
    %c0_i32_0 = arith.constant 0 : i32
    %c0_i32_1 = arith.constant 0 : i32
    %c0_i32_2 = arith.constant 0 : i32
    return %c0_i32, %c0_i32_0, %c0_i32_1 : i32, i32, i32
  }
  func.func @transform_12(%arg0: i32) -> (i32, i32) {
    %c0_i32 = arith.constant 0 : i32
    %c0_i32_0 = arith.constant 0 : i32
    %c0_i32_1 = arith.constant 0 : i32
    return %c0_i32, %c0_i32_0 : i32, i32
  }
  func.func @transform_13(%arg0: i32) -> (i32, i32) {
    %c0_i32 = arith.constant 0 : i32
    %c0_i32_0 = arith.constant 0 : i32
    %c0_i32_1 = arith.constant 0 : i32
    return %c0_i32, %c0_i32_0 : i32, i32
  }
  func.func @transform_14(%arg0: i32) -> (i32, i32) {
    %c0_i32 = arith.constant 0 : i32
    %c0_i32_0 = arith.constant 0 : i32
    %c0_i32_1 = arith.constant 0 : i32
    return %c0_i32, %c0_i32_0 : i32, i32
  }
  func.func @transform_15(%arg0: i32) -> (i32, i32) {
    %c0_i32 = arith.constant 0 : i32
    %c0_i32_0 = arith.constant 0 : i32
    %c0_i32_1 = arith.constant 0 : i32
    return %c0_i32, %c0_i32_0 : i32, i32
  }
  func.func @transform_16(%arg0: i32) -> (i32, i32, i32) {
    %c0_i32 = arith.constant 0 : i32
    %c0_i32_0 = arith.constant 0 : i32
    %c0_i32_1 = arith.constant 0 : i32
    return %arg0, %c0_i32, %c0_i32_0 : i32, i32, i32
  }
  func.func @transform_17(%arg0: i32) -> (i32, i32, i32) {
    %c0_i32 = arith.constant 0 : i32
    %c0_i32_0 = arith.constant 0 : i32
    %c0_i32_1 = arith.constant 0 : i32
    return %arg0, %c0_i32, %c0_i32_0 : i32, i32, i32
  }
}

</mosaic_0001>

<llo_original>
// kernel: dual_channel_encoder_forward.1
$region0: #{dual_channel_encoder_forward.1}
  #allocation0 [shape = 'u32[]', space=smem, size = 0x4, offset = 0x4, fixed_abs, tag = 'smem constant byte address 0x4 - core index']
  #allocation1 [shape = 'u32[144,128]{1,0:T(1,128)}', space=vmem, size = 0x12000, scoped, tag = 'internal scratch']
  %s0 = inlined_call_operand.vmem [shape: f32[4,16,128], index: 0, kind: input, shape index: {}]
  %s1 = inlined_call_operand.vmem [shape: f32[4,1,16], index: 1, kind: input, shape index: {}]
  %s2 = inlined_call_operand.vmem [shape: f32[4,16,1], index: 2, kind: input, shape index: {}]
  %s3 = inlined_call_operand.vmem [shape: bf16[4,16,16], index: 3, kind: input, shape index: {}]
  %s4 = inlined_call_operand.vmem [shape: f32[1,128], index: 4, kind: input, shape index: {}]
  %s5 = inlined_call_operand.vmem [shape: f32[1,128], index: 5, kind: input, shape index: {}]
  %s6 = inlined_call_operand.vmem [shape: bf16[2,128,128], index: 6, kind: input, shape index: {}]
  %s7 = inlined_call_operand.vmem [shape: f32[2,1,128], index: 7, kind: input, shape index: {}]
  %s8 = inlined_call_operand.vmem [shape: bf16[128,128], index: 8, kind: input, shape index: {}]
  %s9 = inlined_call_operand.vmem [shape: bf16[128,128], index: 9, kind: input, shape index: {}]
  %s10 = inlined_call_operand.vmem [shape: bf16[2,128,128], index: 10, kind: input, shape index: {}]
  %s11 = inlined_call_operand.vmem [shape: f32[2,1,128], index: 11, kind: input, shape index: {}]
  %s12 = inlined_call_operand.vmem [shape: bf16[128,128], index: 12, kind: input, shape index: {}]
  %s13 = inlined_call_operand.vmem [shape: f32[1,128], index: 13, kind: input, shape index: {}]
  %s14 = inlined_call_operand.vmem [shape: bf16[128,128], index: 14, kind: input, shape index: {}]
  %s15 = inlined_call_operand.vmem [shape: f32[1,128], index: 15, kind: input, shape index: {}]
  %s16 = inlined_call_operand.hbm [shape: f32[4,16,128], index: 16, kind: output, shape index: {0}]
  %s17 = inlined_call_operand.hbm [shape: f32[4,16,128], index: 17, kind: output, shape index: {1}]
  %18 = xla_tuple %s16, %s17
  %s19 = sld [smem:[#allocation0]]
  $region105: #{dual_channel_encoder_forward.1} parent=0
    _
  %s21 = ssub.s32 1, %s19
  %s22 = scalar_select 0, %s21, %s19
  $region1: #{dual_channel_encoder_forward.1} parent=0
    #allocation2 [shape = 'u8[32768]{0}', space=vmem, size = 0x8000, scoped, tag = 'output window, operand 0']
    #allocation3 [shape = 's32[2]{0}', space=sflag, size = 0x8, scoped, tag = 'scoped memory for dual_channel_encoder_forward.1']
    #allocation4 [shape = 'u8[32768]{0}', space=vmem, size = 0x8000, scoped, tag = 'output window, operand 1']
    #allocation5 [shape = 's32[2]{0}', space=sflag, size = 0x8, scoped, tag = 'scoped memory for dual_channel_encoder_forward.1']
    %23 = vsyncpa [#allocation3], 0
    %s24 = scalar_lea.sflag [#allocation3], 1
    %25 = vsyncpa %s24, 0
    %26 = vsyncpa [#allocation5], 0
    %s27 = scalar_lea.sflag [#allocation5], 1
    %28 = vsyncpa %s27, 0
    loop: start=0, step=1, limit=4
    $region2: #{dual_channel_encoder_forward.1} parent=1 // loop_pre_header
      _
    $region3: #{dual_channel_encoder_forward.1} parent=1 // loop_header
      %s30 = sphi 0, %s34
      %p31 = scmp.ge.s32.totalorder %s30, 4
      %s40 = sphi 0, %s42
      %s43 = sphi 0, %s40
      %s44 = sphi 0, %s43
      %s60 = sphi 0, %s44
      %s66 = sphi 0, %s68
      %s69 = sphi 0, %s66
      %s70 = sphi 0, %s69
      %s86 = sphi 0, %s70
      %s92 = sphi 0, %s94
      %s95 = sphi 0, %s92
      %s96 = sphi 0, %s95
      %s112 = sphi 0, %s96
      %s118 = sphi 0, %s120
      %s121 = sphi 0, %s118
      %s122 = sphi 0, %s121
      %s138 = sphi 0, %s122
      %s142 = sphi 0, %s142
      %s144 = sphi 0, %s142
      %s145 = sphi 0, %s144
      %s159 = sphi 0, %s145
      %s163 = sphi 0, %s163
      %s165 = sphi 0, %s163
      %s166 = sphi 0, %s165
      %s180 = sphi 0, %s166
      %s184 = sphi 0, %s184
      %s186 = sphi 0, %s184
      %s187 = sphi 0, %s186
      %s201 = sphi 0, %s187
      %s205 = sphi 0, %s205
      %s207 = sphi 0, %s205
      %s208 = sphi 0, %s207
      %s222 = sphi 0, %s208
      %s226 = sphi 0, %s226
      %s228 = sphi 0, %s226
      %s229 = sphi 0, %s228
      %s243 = sphi 0, %s229
      %s247 = sphi 0, %s247
      %s249 = sphi 0, %s247
      %s250 = sphi 0, %s249
      %s264 = sphi 0, %s250
      %s268 = sphi 0, %s268
      %s270 = sphi 0, %s268
      %s271 = sphi 0, %s270
      %s285 = sphi 0, %s271
      %s289 = sphi 0, %s289
      %s291 = sphi 0, %s289
      %s292 = sphi 0, %s291
      %s306 = sphi 0, %s292
      %s310 = sphi 0, %s310
      %s312 = sphi 0, %s310
      %s313 = sphi 0, %s312
      %s327 = sphi 0, %s313
      %s331 = sphi 0, %s331
      %s333 = sphi 0, %s331
      %s334 = sphi 0, %s333
      %s348 = sphi 0, %s334
      %s352 = sphi 0, %s352
      %s354 = sphi 0, %s352
      %s355 = sphi 0, %s354
      %s369 = sphi 0, %s355
      %s373 = sphi 0, %s373
      %s375 = sphi 0, %s373
      %s376 = sphi 0, %s375
      %s390 = sphi 0, %s376
      %s396 = sphi 0, %s398
      %s399 = sphi 0, %s396
      %s400 = sphi 0, %s399
      %s416 = sphi 0, %s400
      %s422 = sphi 0, %s424
      %s425 = sphi 0, %s422
      %s426 = sphi 0, %s425
      %s442 = sphi 0, %s426
    $region4: #{dual_channel_encoder_forward.1} parent=1 // loop_header_branch
      %33 = sbr.rel (%p31) target = $region8
    $region5: #{dual_channel_encoder_forward.1} parent=1 // loop_body
      %s35 = ssub.s32 %s30, 1
      %s36 = ssub.s32 %s30, 2
      %s37 = sadd.s32 %s30, 1
      %s38 = ssub.s32 %s30, %s37
      %p39 = scmp.eq.s32.totalorder %s38, 0
      %s41 = sadd.s32 %s40, 1
      %s42 = scalar_select %p39, %s40, %s41
      %p45 = pneg %p39
      %p46 = scmp.eq.s32.totalorder %s30, 1
      %p47 = por %p45, %p46
      %p48 = scmp.ne.s32.totalorder %s40, %s43
      %p49 = scmp.eq.s32.totalorder %s30, 0
      %p50 = por %p48, %p49
      %p51 = scmp.ne.s32.totalorder %s40, %s43
      %p52 = scmp.eq.s32.totalorder %s35, 1
      %p53 = por %p51, %p52
      %p54 = scmp.ne.s32.totalorder %s43, %s44
      %p55 = scmp.eq.s32.totalorder %s35, 0
      %p56 = por %p54, %p55
      %p57 = scmp.ne.s32.totalorder %s43, %s44
      %p58 = scmp.eq.s32.totalorder %s36, 1
      %p59 = por %p57, %p58
      %p61 = scmp.ne.s32.totalorder %s44, %s60
      %p62 = scmp.eq.s32.totalorder %s36, 0
      %p63 = por %p61, %p62
      %s64 = ssub.s32 %s30, %s37
      %p65 = scmp.eq.s32.totalorder %s64, 0
      %s67 = sadd.s32 %s66, 1
      %s68 = scalar_select %p65, %s66, %s67
      %p71 = pneg %p65
      %p72 = scmp.eq.s32.totalorder %s30, 1
      %p73 = por %p71, %p72
      %p74 = scmp.ne.s32.totalorder %s66, %s69
      %p75 = scmp.eq.s32.totalorder %s30, 0
      %p76 = por %p74, %p75
      %p77 = scmp.ne.s32.totalorder %s66, %s69
      %p78 = scmp.eq.s32.totalorder %s35, 1
      %p79 = por %p77, %p78
      %p80 = scmp.ne.s32.totalorder %s69, %s70
      %p81 = scmp.eq.s32.totalorder %s35, 0
      %p82 = por %p80, %p81
      %p83 = scmp.ne.s32.totalorder %s69, %s70
      %p84 = scmp.eq.s32.totalorder %s36, 1
      %p85 = por %p83, %p84
      %p87 = scmp.ne.s32.totalorder %s70, %s86
      %p88 = scmp.eq.s32.totalorder %s36, 0
      %p89 = por %p87, %p88
      %s90 = ssub.s32 %s30, %s37
      %p91 = scmp.eq.s32.totalorder %s90, 0
      %s93 = sadd.s32 %s92, 1
      %s94 = scalar_select %p91, %s92, %s93
      %p97 = pneg %p91
      %p98 = scmp.eq.s32.totalorder %s30, 1
      %p99 = por %p97, %p98
      %p100 = scmp.ne.s32.totalorder %s92, %s95
      %p101 = scmp.eq.s32.totalorder %s30, 0
      %p102 = por %p100, %p101
      %p103 = scmp.ne.s32.totalorder %s92, %s95
      %p104 = scmp.eq.s32.totalorder %s35, 1
      %p105 = por %p103, %p104
      %p106 = scmp.ne.s32.totalorder %s95, %s96
      %p107 = scmp.eq.s32.totalorder %s35, 0
      %p108 = por %p106, %p107
      %p109 = scmp.ne.s32.totalorder %s95, %s96
      %p110 = scmp.eq.s32.totalorder %s36, 1
      %p111 = por %p109, %p110
      %p113 = scmp.ne.s32.totalorder %s96, %s112
      %p114 = scmp.eq.s32.totalorder %s36, 0
      %p115 = por %p113, %p114
      %s116 = ssub.s32 %s30, %s37
      %p117 = scmp.eq.s32.totalorder %s116, 0
      %s119 = sadd.s32 %s118, 1
      %s120 = scalar_select %p117, %s118, %s119
      %p123 = pneg %p117
      %p124 = scmp.eq.s32.totalorder %s30, 1
      %p125 = por %p123, %p124
      %p126 = scmp.ne.s32.totalorder %s118, %s121
      %p127 = scmp.eq.s32.totalorder %s30, 0
      %p128 = por %p126, %p127
      %p129 = scmp.ne.s32.totalorder %s118, %s121
      %p130 = scmp.eq.s32.totalorder %s35, 1
      %p131 = por %p129, %p130
      %p132 = scmp.ne.s32.totalorder %s121, %s122
      %p133 = scmp.eq.s32.totalorder %s35, 0
      %p134 = por %p132, %p133
      %p135 = scmp.ne.s32.totalorder %s121, %s122
      %p136 = scmp.eq.s32.totalorder %s36, 1
      %p137 = por %p135, %p136
      %p139 = scmp.ne.s32.totalorder %s122, %s138
      %p140 = scmp.eq.s32.totalorder %s36, 0
      %p141 = por %p139, %p140
      %s143 = sadd.s32 %s142, 1
      %p146 = scmp.eq.s32.totalorder %s30, 1
      %p147 = scmp.ne.s32.totalorder %s142, %s144
      %p148 = scmp.eq.s32.totalorder %s30, 0
      %p149 = por %p147, %p148
      %p150 = scmp.ne.s32.totalorder %s142, %s144
      %p151 = scmp.eq.s32.totalorder %s35, 1
      %p152 = por %p150, %p151
      %p153 = scmp.ne.s32.totalorder %s144, %s145
      %p154 = scmp.eq.s32.totalorder %s35, 0
      %p155 = por %p153, %p154
      %p156 = scmp.ne.s32.totalorder %s144, %s145
      %p157 = scmp.eq.s32.totalorder %s36, 1
      %p158 = por %p156, %p157
      %p160 = scmp.ne.s32.totalorder %s145, %s159
      %p161 = scmp.eq.s32.totalorder %s36, 0
      %p162 = por %p160, %p161
      %s164 = sadd.s32 %s163, 1
      %p167 = scmp.eq.s32.totalorder %s30, 1
      %p168 = scmp.ne.s32.totalorder %s163, %s165
      %p169 = scmp.eq.s32.totalorder %s30, 0
      %p170 = por %p168, %p169
      %p171 = scmp.ne.s32.totalorder %s163, %s165
      %p172 = scmp.eq.s32.totalorder %s35, 1
      %p173 = por %p171, %p172
      %p174 = scmp.ne.s32.totalorder %s165, %s166
      %p175 = scmp.eq.s32.totalorder %s35, 0
      %p176 = por %p174, %p175
      %p177 = scmp.ne.s32.totalorder %s165, %s166
      %p178 = scmp.eq.s32.totalorder %s36, 1
      %p179 = por %p177, %p178
      %p181 = scmp.ne.s32.totalorder %s166, %s180
      %p182 = scmp.eq.s32.totalorder %s36, 0
      %p183 = por %p181, %p182
      %s185 = sadd.s32 %s184, 1
      %p188 = scmp.eq.s32.totalorder %s30, 1
      %p189 = scmp.ne.s32.totalorder %s184, %s186
      %p190 = scmp.eq.s32.totalorder %s30, 0
      %p191 = por %p189, %p190
      %p192 = scmp.ne.s32.totalorder %s184, %s186
      %p193 = scmp.eq.s32.totalorder %s35, 1
      %p194 = por %p192, %p193
      %p195 = scmp.ne.s32.totalorder %s186, %s187
      %p196 = scmp.eq.s32.totalorder %s35, 0
      %p197 = por %p195, %p196
      %p198 = scmp.ne.s32.totalorder %s186, %s187
      %p199 = scmp.eq.s32.totalorder %s36, 1
      %p200 = por %p198, %p199
      %p202 = scmp.ne.s32.totalorder %s187, %s201
      %p203 = scmp.eq.s32.totalorder %s36, 0
      %p204 = por %p202, %p203
      %s206 = sadd.s32 %s205, 1
      %p209 = scmp.eq.s32.totalorder %s30, 1
      %p210 = scmp.ne.s32.totalorder %s205, %s207
      %p211 = scmp.eq.s32.totalorder %s30, 0
      %p212 = por %p210, %p211
      %p213 = scmp.ne.s32.totalorder %s205, %s207
      %p214 = scmp.eq.s32.totalorder %s35, 1
      %p215 = por %p213, %p214
      %p216 = scmp.ne.s32.totalorder %s207, %s208
      %p217 = scmp.eq.s32.totalorder %s35, 0
      %p218 = por %p216, %p217
      %p219 = scmp.ne.s32.totalorder %s207, %s208
      %p220 = scmp.eq.s32.totalorder %s36, 1
      %p221 = por %p219, %p220
      %p223 = scmp.ne.s32.totalorder %s208, %s222
      %p224 = scmp.eq.s32.totalorder %s36, 0
      %p225 = por %p223, %p224
      %s227 = sadd.s32 %s226, 1
      %p230 = scmp.eq.s32.totalorder %s30, 1
      %p231 = scmp.ne.s32.totalorder %s226, %s228
      %p232 = scmp.eq.s32.totalorder %s30, 0
      %p233 = por %p231, %p232
      %p234 = scmp.ne.s32.totalorder %s226, %s228
      %p235 = scmp.eq.s32.totalorder %s35, 1
      %p236 = por %p234, %p235
      %p237 = scmp.ne.s32.totalorder %s228, %s229
      %p238 = scmp.eq.s32.totalorder %s35, 0
      %p239 = por %p237, %p238
      %p240 = scmp.ne.s32.totalorder %s228, %s229
      %p241 = scmp.eq.s32.totalorder %s36, 1
      %p242 = por %p240, %p241
      %p244 = scmp.ne.s32.totalorder %s229, %s243
      %p245 = scmp.eq.s32.totalorder %s36, 0
      %p246 = por %p244, %p245
      %s248 = sadd.s32 %s247, 1
      %p251 = scmp.eq.s32.totalorder %s30, 1
      %p252 = scmp.ne.s32.totalorder %s247, %s249
      %p253 = scmp.eq.s32.totalorder %s30, 0
      %p254 = por %p252, %p253
      %p255 = scmp.ne.s32.totalorder %s247, %s249
      %p256 = scmp.eq.s32.totalorder %s35, 1
      %p257 = por %p255, %p256
      %p258 = scmp.ne.s32.totalorder %s249, %s250
      %p259 = scmp.eq.s32.totalorder %s35, 0
      %p260 = por %p258, %p259
      %p261 = scmp.ne.s32.totalorder %s249, %s250
      %p262 = scmp.eq.s32.totalorder %s36, 1
      %p263 = por %p261, %p262
      %p265 = scmp.ne.s32.totalorder %s250, %s264
      %p266 = scmp.eq.s32.totalorder %s36, 0
      %p267 = por %p265, %p266
      %s269 = sadd.s32 %s268, 1
      %p272 = scmp.eq.s32.totalorder %s30, 1
      %p273 = scmp.ne.s32.totalorder %s268, %s270
      %p274 = scmp.eq.s32.totalorder %s30, 0
      %p275 = por %p273, %p274
      %p276 = scmp.ne.s32.totalorder %s268, %s270
      %p277 = scmp.eq.s32.totalorder %s35, 1
      %p278 = por %p276, %p277
      %p279 = scmp.ne.s32.totalorder %s270, %s271
      %p280 = scmp.eq.s32.totalorder %s35, 0
      %p281 = por %p279, %p280
      %p282 = scmp.ne.s32.totalorder %s270, %s271
      %p283 = scmp.eq.s32.totalorder %s36, 1
      %p284 = por %p282, %p283
      %p286 = scmp.ne.s32.totalorder %s271, %s285
      %p287 = scmp.eq.s32.totalorder %s36, 0
      %p288 = por %p286, %p287
      %s290 = sadd.s32 %s289, 1
      %p293 = scmp.eq.s32.totalorder %s30, 1
      %p294 = scmp.ne.s32.totalorder %s289, %s291
      %p295 = scmp.eq.s32.totalorder %s30, 0
      %p296 = por %p294, %p295
      %p297 = scmp.ne.s32.totalorder %s289, %s291
      %p298 = scmp.eq.s32.totalorder %s35, 1
      %p299 = por %p297, %p298
      %p300 = scmp.ne.s32.totalorder %s291, %s292
      %p301 = scmp.eq.s32.totalorder %s35, 0
      %p302 = por %p300, %p301
      %p303 = scmp.ne.s32.totalorder %s291, %s292
      %p304 = scmp.eq.s32.totalorder %s36, 1
      %p305 = por %p303, %p304
      %p307 = scmp.ne.s32.totalorder %s292, %s306
      %p308 = scmp.eq.s32.totalorder %s36, 0
      %p309 = por %p307, %p308
      %s311 = sadd.s32 %s310, 1
      %p314 = scmp.eq.s32.totalorder %s30, 1
      %p315 = scmp.ne.s32.totalorder %s310, %s312
      %p316 = scmp.eq.s32.totalorder %s30, 0
      %p317 = por %p315, %p316
      %p318 = scmp.ne.s32.totalorder %s310, %s312
      %p319 = scmp.eq.s32.totalorder %s35, 1
      %p320 = por %p318, %p319
      %p321 = scmp.ne.s32.totalorder %s312, %s313
      %p322 = scmp.eq.s32.totalorder %s35, 0
      %p323 = por %p321, %p322
      %p324 = scmp.ne.s32.totalorder %s312, %s313
      %p325 = scmp.eq.s32.totalorder %s36, 1
      %p326 = por %p324, %p325
      %p328 = scmp.ne.s32.totalorder %s313, %s327
      %p329 = scmp.eq.s32.totalorder %s36, 0
      %p330 = por %p328, %p329
      %s332 = sadd.s32 %s331, 1
      %p335 = scmp.eq.s32.totalorder %s30, 1
      %p336 = scmp.ne.s32.totalorder %s331, %s333
      %p337 = scmp.eq.s32.totalorder %s30, 0
      %p338 = por %p336, %p337
      %p339 = scmp.ne.s32.totalorder %s331, %s333
      %p340 = scmp.eq.s32.totalorder %s35, 1
      %p341 = por %p339, %p340
      %p342 = scmp.ne.s32.totalorder %s333, %s334
      %p343 = scmp.eq.s32.totalorder %s35, 0
      %p344 = por %p342, %p343
      %p345 = scmp.ne.s32.totalorder %s333, %s334
      %p346 = scmp.eq.s32.totalorder %s36, 1
      %p347 = por %p345, %p346
      %p349 = scmp.ne.s32.totalorder %s334, %s348
      %p350 = scmp.eq.s32.totalorder %s36, 0
      %p351 = por %p349, %p350
      %s353 = sadd.s32 %s352, 1
      %p356 = scmp.eq.s32.totalorder %s30, 1
      %p357 = scmp.ne.s32.totalorder %s352, %s354
      %p358 = scmp.eq.s32.totalorder %s30, 0
      %p359 = por %p357, %p358
      %p360 = scmp.ne.s32.totalorder %s352, %s354
      %p361 = scmp.eq.s32.totalorder %s35, 1
      %p362 = por %p360, %p361
      %p363 = scmp.ne.s32.totalorder %s354, %s355
      %p364 = scmp.eq.s32.totalorder %s35, 0
      %p365 = por %p363, %p364
      %p366 = scmp.ne.s32.totalorder %s354, %s355
      %p367 = scmp.eq.s32.totalorder %s36, 1
      %p368 = por %p366, %p367
      %p370 = scmp.ne.s32.totalorder %s355, %s369
      %p371 = scmp.eq.s32.totalorder %s36, 0
      %p372 = por %p370, %p371
      %s374 = sadd.s32 %s373, 1
      %p377 = scmp.eq.s32.totalorder %s30, 1
      %p378 = scmp.ne.s32.totalorder %s373, %s375
      %p379 = scmp.eq.s32.totalorder %s30, 0
      %p380 = por %p378, %p379
      %p381 = scmp.ne.s32.totalorder %s373, %s375
      %p382 = scmp.eq.s32.totalorder %s35, 1
      %p383 = por %p381, %p382
      %p384 = scmp.ne.s32.totalorder %s375, %s376
      %p385 = scmp.eq.s32.totalorder %s35, 0
      %p386 = por %p384, %p385
      %p387 = scmp.ne.s32.totalorder %s375, %s376
      %p388 = scmp.eq.s32.totalorder %s36, 1
      %p389 = por %p387, %p388
      %p391 = scmp.ne.s32.totalorder %s376, %s390
      %p392 = scmp.eq.s32.totalorder %s36, 0
      %p393 = por %p391, %p392
      %s394 = ssub.s32 %s30, %s37
      %p395 = scmp.eq.s32.totalorder %s394, 0
      %s397 = sadd.s32 %s396, 1
      %s398 = scalar_select %p395, %s396, %s397
      %p401 = pneg %p395
      %p402 = scmp.eq.s32.totalorder %s30, 1
      %p403 = por %p401, %p402
      %p404 = scmp.ne.s32.totalorder %s396, %s399
      %p405 = scmp.eq.s32.totalorder %s30, 0
      %p406 = por %p404, %p405
      %p407 = scmp.ne.s32.totalorder %s396, %s399
      %p408 = scmp.eq.s32.totalorder %s35, 1
      %p409 = por %p407, %p408
      %p410 = scmp.ne.s32.totalorder %s399, %s400
      %p411 = scmp.eq.s32.totalorder %s35, 0
      %p412 = por %p410, %p411
      %p413 = scmp.ne.s32.totalorder %s399, %s400
      %p414 = scmp.eq.s32.totalorder %s36, 1
      %p415 = por %p413, %p414
      %p417 = scmp.ne.s32.totalorder %s400, %s416
      %p418 = scmp.eq.s32.totalorder %s36, 0
      %p419 = por %p417, %p418
      %s420 = ssub.s32 %s30, %s37
      %p421 = scmp.eq.s32.totalorder %s420, 0
      %s423 = sadd.s32 %s422, 1
      %s424 = scalar_select %p421, %s422, %s423
      %p427 = pneg %p421
      %p428 = scmp.eq.s32.totalorder %s30, 1
      %p429 = por %p427, %p428
      %p430 = scmp.ne.s32.totalorder %s422, %s425
      %p431 = scmp.eq.s32.totalorder %s30, 0
      %p432 = por %p430, %p431
      %p433 = scmp.ne.s32.totalorder %s422, %s425
      %p434 = scmp.eq.s32.totalorder %s35, 1
      %p435 = por %p433, %p434
      %p436 = scmp.ne.s32.totalorder %s425, %s426
      %p437 = scmp.eq.s32.totalorder %s35, 0
      %p438 = por %p436, %p437
      %p439 = scmp.ne.s32.totalorder %s425, %s426
      %p440 = scmp.eq.s32.totalorder %s36, 1
      %p441 = por %p439, %p440
      %p443 = scmp.ne.s32.totalorder %s426, %s442
      %p444 = scmp.eq.s32.totalorder %s36, 0
      %p445 = por %p443, %p444
      %p446 = scmp.le.s32.totalorder 1, %s30
      %p447 = scmp.lt.s32.totalorder %s30, 3
      %p448 = pnand %p446, %p447
      %p449 = pneg %p448
      // Predicated region
      $region9: #{dual_channel_encoder_forward.1} parent=5 // pred_check
        _
      $region10: #{dual_channel_encoder_forward.1} parent=5 // pred_check_branch
        %451 = sbr.rel (%p448) target = $region12
      $region11: #{dual_channel_encoder_forward.1} parent=5 // pred_region
        %s452 = ssub.s32 %s30, 1
        // Predicated region
        $region13: #{dual_channel_encoder_forward.1} parent=11 // pred_check
          %p453 = pneg %p155
        $region14: #{dual_channel_encoder_forward.1} parent=11 // pred_check_branch
          %455 = sbr.rel (%p453) target = $region16
        $region15: #{dual_channel_encoder_forward.1} parent=11 // pred_region
          _
        $region16: #{dual_channel_encoder_forward.1} parent=11 // pred_fallthru
          _
        // Predicated region
        $region17: #{dual_channel_encoder_forward.1} parent=11 // pred_check
          %p456 = pneg %p176
        $region18: #{dual_channel_encoder_forward.1} parent=11 // pred_check_branch
          %458 = sbr.rel (%p456) target = $region20
        $region19: #{dual_channel_encoder_forward.1} parent=11 // pred_region
          _
        $region20: #{dual_channel_encoder_forward.1} parent=11 // pred_fallthru
          _
        // Predicated region
        $region21: #{dual_channel_encoder_forward.1} parent=11 // pred_check
          %p459 = pneg %p197
        $region22: #{dual_channel_encoder_forward.1} parent=11 // pred_check_branch
          %461 = sbr.rel (%p459) target = $region24
        $region23: #{dual_channel_encoder_forward.1} parent=11 // pred_region
          _
        $region24: #{dual_channel_encoder_forward.1} parent=11 // pred_fallthru
          _
        // Predicated region
        $region25: #{dual_channel_encoder_forward.1} parent=11 // pred_check
          %p462 = pneg %p218
        $region26: #{dual_channel_encoder_forward.1} parent=11 // pred_check_branch
          %464 = sbr.rel (%p462) target = $region28
        $region27: #{dual_channel_encoder_forward.1} parent=11 // pred_region
          _
        $region28: #{dual_channel_encoder_forward.1} parent=11 // pred_fallthru
          _
        // Predicated region
        $region29: #{dual_channel_encoder_forward.1} parent=11 // pred_check
          %p465 = pneg %p239
        $region30: #{dual_channel_encoder_forward.1} parent=11 // pred_check_branch
          %467 = sbr.rel (%p465) target = $region32
        $region31: #{dual_channel_encoder_forward.1} parent=11 // pred_region
          _
        $region32: #{dual_channel_encoder_forward.1} parent=11 // pred_fallthru
          _
        // Predicated region
        $region33: #{dual_channel_encoder_forward.1} parent=11 // pred_check
          %p468 = pneg %p260
        $region34: #{dual_channel_encoder_forward.1} parent=11 // pred_check_branch
          %470 = sbr.rel (%p468) target = $region36
        $region35: #{dual_channel_encoder_forward.1} parent=11 // pred_region
          _
        $region36: #{dual_channel_encoder_forward.1} parent=11 // pred_fallthru
          _
        // Predicated region
        $region37: #{dual_channel_encoder_forward.1} parent=11 // pred_check
          %p471 = pneg %p281
        $region38: #{dual_channel_encoder_forward.1} parent=11 // pred_check_branch
          %473 = sbr.rel (%p471) target = $region40
        $region39: #{dual_channel_encoder_forward.1} parent=11 // pred_region
          _
        $region40: #{dual_channel_encoder_forward.1} parent=11 // pred_fallthru
          _
        // Predicated region
        $region41: #{dual_channel_encoder_forward.1} parent=11 // pred_check
          %p474 = pneg %p302
        $region42: #{dual_channel_encoder_forward.1} parent=11 // pred_check_branch
          %476 = sbr.rel (%p474) target = $region44
        $region43: #{dual_channel_encoder_forward.1} parent=11 // pred_region
          _
        $region44: #{dual_channel_encoder_forward.1} parent=11 // pred_fallthru
          _
        // Predicated region
        $region45: #{dual_channel_encoder_forward.1} parent=11 // pred_check
          %p477 = pneg %p323
        $region46: #{dual_channel_encoder_forward.1} parent=11 // pred_check_branch
          %479 = sbr.rel (%p477) target = $region48
        $region47: #{dual_channel_encoder_forward.1} parent=11 // pred_region
          _
        $region48: #{dual_channel_encoder_forward.1} parent=11 // pred_fallthru
          _
        // Predicated region
        $region49: #{dual_channel_encoder_forward.1} parent=11 // pred_check
          %p480 = pneg %p344
        $region50: #{dual_channel_encoder_forward.1} parent=11 // pred_check_branch
          %482 = sbr.rel (%p480) target = $region52
        $region51: #{dual_channel_encoder_forward.1} parent=11 // pred_region
          _
        $region52: #{dual_channel_encoder_forward.1} parent=11 // pred_fallthru
          _
        // Predicated region
        $region53: #{dual_channel_encoder_forward.1} parent=11 // pred_check
          %p483 = pneg %p365
        $region54: #{dual_channel_encoder_forward.1} parent=11 // pred_check_branch
          %485 = sbr.rel (%p483) target = $region56
        $region55: #{dual_channel_encoder_forward.1} parent=11 // pred_region
          _
        $region56: #{dual_channel_encoder_forward.1} parent=11 // pred_fallthru
          _
        // Predicated region
        $region57: #{dual_channel_encoder_forward.1} parent=11 // pred_check
          %p486 = pneg %p386
        $region58: #{dual_channel_encoder_forward.1} parent=11 // pred_check_branch
          %488 = sbr.rel (%p486) target = $region60
        $region59: #{dual_channel_encoder_forward.1} parent=11 // pred_region
          _
        $region60: #{dual_channel_encoder_forward.1} parent=11 // pred_fallthru
          _
      $region12: #{dual_channel_encoder_forward.1} parent=5 // pred_fallthru
        _
      %p489 = scmp.lt.s32.totalorder %s30, 2
      // Predicated region
      $region61: #{dual_channel_encoder_forward.1} parent=5 // pred_check
        %p490 = pneg %p489
      $region62: #{dual_channel_encoder_forward.1} parent=5 // pred_check_branch
        %492 = sbr.rel (%p490) target = $region64
      $region63: #{dual_channel_encoder_forward.1} parent=5 // pred_region
        // Predicated region
        $region65: #{dual_channel_encoder_forward.1} parent=63 // pred_check
          %p493 = pneg %p50
        $region66: #{dual_channel_encoder_forward.1} parent=63 // pred_check_branch
          %495 = sbr.rel (%p493) target = $region68
        $region67: #{dual_channel_encoder_forward.1} parent=63 // pred_region
          %s496 = smul.u32 2, %s30
          %p497 = scmp.lt.s32.totalorder %s496, 3
          %s498 = scalar_select %p497, %s496, 3
          %s499 = smul.addr %s498, 2
          %s500 = smul.addr %s499, 8
          %s501 = scalar_lea.vmem %s0, %s500
          %s502 = smul.u32 2, %s30
        $region68: #{dual_channel_encoder_forward.1} parent=63 // pred_fallthru
          _
        // Predicated region
        $region69: #{dual_channel_encoder_forward.1} parent=63 // pred_check
          %p503 = pneg %p76
        $region70: #{dual_channel_encoder_forward.1} parent=63 // pred_check_branch
          %505 = sbr.rel (%p503) target = $region72
        $region71: #{dual_channel_encoder_forward.1} parent=63 // pred_region
          %s506 = smul.u32 2, %s30
          %p507 = scmp.lt.s32.totalorder %s506, 3
          %s508 = scalar_select %p507, %s506, 3
          %s509 = scalar_lea.vmem %s1, %s508
          %s510 = smul.u32 2, %s30
        $region72: #{dual_channel_encoder_forward.1} parent=63 // pred_fallthru
          _
        // Predicated region
        $region73: #{dual_channel_encoder_forward.1} parent=63 // pred_check
          %p511 = pneg %p102
        $region74: #{dual_channel_encoder_forward.1} parent=63 // pred_check_branch
          %513 = sbr.rel (%p511) target = $region76
        $region75: #{dual_channel_encoder_forward.1} parent=63 // pred_region
          %s514 = smul.u32 2, %s30
          %p515 = scmp.lt.s32.totalorder %s514, 3
          %s516 = scalar_select %p515, %s514, 3
          %s517 = smul.addr %s516, 2
          %s518 = smul.addr %s517, 8
          %s519 = scalar_lea.vmem %s2, %s518
          %s520 = smul.u32 2, %s30
        $region76: #{dual_channel_encoder_forward.1} parent=63 // pred_fallthru
          _
        // Predicated region
        $region77: #{dual_channel_encoder_forward.1} parent=63 // pred_check
          %p521 = pneg %p128
        $region78: #{dual_channel_encoder_forward.1} parent=63 // pred_check_branch
          %523 = sbr.rel (%p521) target = $region80
        $region79: #{dual_channel_encoder_forward.1} parent=63 // pred_region
          %s524 = smul.u32 2, %s30
          %p525 = scmp.lt.s32.totalorder %s524, 3
          %s526 = scalar_select %p525, %s524, 3
          %s527 = smul.addr %s526, 2
          %s528 = smul.addr %s527, 4
          %s529 = scalar_lea.vmem %s3, %s528
          %s530 = smul.u32 2, %s30
        $region80: #{dual_channel_encoder_forward.1} parent=63 // pred_fallthru
          _
      $region64: #{dual_channel_encoder_forward.1} parent=5 // pred_fallthru
        _
      %p531 = scmp.le.s32.totalorder 1, %s30
      %p532 = scmp.lt.s32.totalorder %s30, 3
      %p533 = pnand %p531, %p532
      %p534 = pneg %p533
      // Predicated region
      $region81: #{dual_channel_encoder_forward.1} parent=5 // pred_check
        _
      $region82: #{dual_channel_encoder_forward.1} parent=5 // pred_check_branch
        %536 = sbr.rel (%p533) target = $region84
      $region83: #{dual_channel_encoder_forward.1} parent=5 // pred_region
        %s537 = ssub.s32 %s30, 1
        %s538 = smul.u32 2, %s35
        %p539 = scmp.lt.s32.totalorder %s538, 3
        %s540 = scalar_select %p539, %s538, 3
        %s541 = smul.addr %s540, 2
        %s542 = smul.addr %s541, 8
        %s543 = scalar_lea.vmem %s0, %s542
        %p544 = pneg %p56
        %p545 = pneg %p53
        %s546 = smul.u32 2, %s35
        %p547 = scmp.lt.s32.totalorder %s546, 3
        %s548 = scalar_select %p547, %s546, 3
        %s549 = scalar_lea.vmem %s1, %s548
        %p550 = pneg %p82
        %p551 = pneg %p79
        %s552 = smul.u32 2, %s35
        %p553 = scmp.lt.s32.totalorder %s552, 3
        %s554 = scalar_select %p553, %s552, 3
        %s555 = smul.addr %s554, 2
        %s556 = smul.addr %s555, 8
        %s557 = scalar_lea.vmem %s2, %s556
        %p558 = pneg %p108
        %p559 = pneg %p105
        %s560 = smul.u32 2, %s35
        %p561 = scmp.lt.s32.totalorder %s560, 3
        %s562 = scalar_select %p561, %s560, 3
        %s563 = smul.addr %s562, 2
        %s564 = smul.addr %s563, 4
        %s565 = scalar_lea.vmem %s3, %s564
        %p566 = pneg %p134
        %p567 = pneg %p131
        %p568 = pneg %p155
        %p569 = pneg %p152
        %p570 = pneg %p176
        %p571 = pneg %p173
        %p572 = pneg %p197
        %p573 = pneg %p194
        %p574 = pneg %p218
        %p575 = pneg %p215
        %p576 = pneg %p239
        %p577 = pneg %p236
        %p578 = pneg %p260
        %p579 = pneg %p257
        %p580 = pneg %p281
        %p581 = pneg %p278
        %p582 = pneg %p302
        %p583 = pneg %p299
        %p584 = pneg %p323
        %p585 = pneg %p320
        %p586 = pneg %p344
        %p587 = pneg %p341
        %p588 = pneg %p365
        %p589 = pneg %p362
        %p590 = pneg %p386
        %p591 = pneg %p383
        %p592 = pneg %p412
        %p593 = pneg %p409
        %s594 = sand.u32 %s399, 1
        %s595 = scalar_lea.sflag [#allocation3], %s594
        %s596 = sand.u32 %s399, 1
        %s597 = smul.addr %s596, 32
        %s598 = scalar_lea.vmem [#allocation2], %s597
        %p599 = pneg %p438
        %p600 = pneg %p435
        %s601 = sand.u32 %s425, 1
        %s602 = scalar_lea.sflag [#allocation5], %s601
        %s603 = sand.u32 %s425, 1
        %s604 = smul.addr %s603, 32
        %s605 = scalar_lea.vmem [#allocation4], %s604
        %s606 = smul.u32 2, %s35
        %p607 = scmp.lt.s32.totalorder %s606, 3
        %s608 = scalar_select %p607, %s606, 3
        %s609 = smul.addr %s608, 2
        %s610 = smul.addr %s609, 8
        %s611 = scalar_lea.vmem %s0, %s610
        %s612 = smul.u32 2, %s35
        %s613 = smul.u32 2, %s35
        %p614 = scmp.lt.s32.totalorder %s613, 3
        %s615 = scalar_select %p614, %s613, 3
        %s616 = scalar_lea.vmem %s1, %s615
        %s617 = smul.u32 2, %s35
        %s618 = smul.u32 2, %s35
        %p619 = scmp.lt.s32.totalorder %s618, 3
        %s620 = scalar_select %p619, %s618, 3
        %s621 = smul.addr %s620, 2
        %s622 = smul.addr %s621, 8
        %s623 = scalar_lea.vmem %s2, %s622
        %s624 = smul.u32 2, %s35
        %s625 = smul.u32 2, %s35
        %p626 = scmp.lt.s32.totalorder %s625, 3
        %s627 = scalar_select %p626, %s625, 3
        %s628 = smul.addr %s627, 2
        %s629 = smul.addr %s628, 4
        %s630 = scalar_lea.vmem %s3, %s629
        %s631 = smul.u32 2, %s35
        %s632 = smul.u32 2, %s35
        %s633 = smul.u32 2, %s35
        %v635 = vld [vmem:[%s611] sm:$0xff]
        %v636 = vld [vmem:[%s611 + $0x8] sm:$0xff]
        %v637 = vld [vmem:[%s611 + $0x10] sm:$0xff]
        %v638 = vld [vmem:[%s611 + $0x18] sm:$0xff]
        %639 = vadd.xlane.f32.xlu0 %v635
        %v640 = vpop.xlane.xlu0 %639
        %641 = vadd.xlane.f32.xlu0 %v636
        %v642 = vpop.xlane.xlu0 %641
        %643 = vadd.xlane.f32.xlu0 %v637
        %v644 = vpop.xlane.xlu0 %643
        %645 = vadd.xlane.f32.xlu0 %v638
        %v646 = vpop.xlane.xlu0 %645
        %v647 = vrcp.pop 128.0
        %v648 = vmul.f32 %v640, %v647
        %v649 = vmul.f32 %v642, %v647
        %v650 = vmul.f32 %v644, %v647
        %v651 = vmul.f32 %v646, %v647
        %v652 = vsub.f32 %v635, %v648
        %v653 = vsub.f32 %v636, %v649
        %v654 = vsub.f32 %v637, %v650
        %v655 = vsub.f32 %v638, %v651
        %v656 = vmul.f32 %v652, %v652
        %v657 = vmul.f32 %v653, %v653
        %v658 = vmul.f32 %v654, %v654
        %v659 = vmul.f32 %v655, %v655
        %660 = vadd.xlane.f32.xlu0 %v656
        %v661 = vpop.xlane.xlu0 %660
        %662 = vadd.xlane.f32.xlu0 %v657
        %v663 = vpop.xlane.xlu0 %662
        %664 = vadd.xlane.f32.xlu0 %v658
        %v665 = vpop.xlane.xlu0 %664
        %666 = vadd.xlane.f32.xlu0 %v659
        %v667 = vpop.xlane.xlu0 %666
        %v668 = vmul.f32 %v661, %v647
        %v669 = vmul.f32 %v663, %v647
        %v670 = vmul.f32 %v665, %v647
        %v671 = vmul.f32 %v667, %v647
        %v672 = vadd.f32 %v668, 1e-05
        %v673 = vadd.f32 %v669, 1e-05
        %v674 = vadd.f32 %v670, 1e-05
        %v675 = vadd.f32 %v671, 1e-05
        %v676 = vrsqrt.pop %v672
        %v677 = vrsqrt.pop %v673
        %v678 = vrsqrt.pop %v674
        %v679 = vrsqrt.pop %v675
        %v680 = vmul.f32 %v652, %v676
        %v681 = vmul.f32 %v653, %v677
        %v682 = vmul.f32 %v654, %v678
        %v683 = vmul.f32 %v655, %v679
        %v684 = vld [vmem:[%s4] sm:$0x1]
        %v686 = vlaneseq
        %v687 = vshrl.u32 %v686, 7
        %v688 = vsub.s32 0, %v687
        %v689 = vrot.slane %v684, %v688
        %v691 = vmul.f32 %v680, %v689
        %v692 = vmul.f32 %v681, %v689
        %v693 = vmul.f32 %v682, %v689
        %v694 = vmul.f32 %v683, %v689
        %v695 = vld [vmem:[%s5] sm:$0x1]
        %v697 = vlaneseq
        %v698 = vshrl.u32 %v697, 7
        %v699 = vsub.s32 0, %v698
        %v700 = vrot.slane %v695, %v699
        %v702 = vadd.f32 %v691, %v700
        %v703 = vadd.f32 %v692, %v700
        %v704 = vadd.f32 %v693, %v700
        %v705 = vadd.f32 %v694, %v700
        %v706 = vrot.slane %v702, 1
        %v707 = vrot.slane %v703, 1
        %v708 = vrot.slane %v704, 1
        %v709 = vrot.slane %v705, 1
        %v710 = vlaneseq
        %v711 = vshrl.u32 %v710, 7
        %vm712 = vcmp.lt.s32.totalorder %v711, 7
        %v713 = vsel %vm712, %v708, %v709
        %v714 = vsel %vm712, %v707, %v708
        %v715 = vsel %vm712, %v706, %v707
        %v716 = vsel %vm712, %v709, %v706
        %v717 = vld [vmem:[%s623] sm:$0xff]
        %v718 = vld [vmem:[%s623 + $0x8] sm:$0xff]
        %v719 = vld [vmem:[%s623 + $0x10] sm:$0xff]
        %v720 = vld [vmem:[%s623 + $0x18] sm:$0xff]
        %722 = vset.pattern.permute.xlu0 0
        %723 = vperm.xlu0 %722, %v717
        %v724 = vpop.permute.xlu0 %723
        %727 = vset.pattern.permute.xlu0 0
        %728 = vperm.xlu0 %727, %v718
        %v729 = vpop.permute.xlu0 %728
        %732 = vset.pattern.permute.xlu0 0
        %733 = vperm.xlu0 %732, %v719
        %v734 = vpop.permute.xlu0 %733
        %737 = vset.pattern.permute.xlu0 0
        %738 = vperm.xlu0 %737, %v720
        %v739 = vpop.permute.xlu0 %738
        %v741 = vmul.f32 %v715, %v724
        %v742 = vmul.f32 %v714, %v729
        %v743 = vmul.f32 %v713, %v734
        %v744 = vmul.f32 %v716, %v739
        %v745 = vpack.c.bf16 %v742, %v741
        %v746 = vpack.c.bf16 %v744, %v743
        %v747 = vld [vmem:[%s630] sm:$0xf]
        %v748 = vld [vmem:[%s630 + $0x4] sm:$0xf]
        %v749 = vunpack.c.l.bf16 %v747
        %v750 = vunpack.c.l.bf16 %v748
        %vm751 = vcmask 130048
        %v752 = vsel %vm751, %v749, 0.0
        %753 = vadd.xlane.f32.xlu0 %v752
        %v754 = vpop.xlane.xlu0 %753
        %v755 = vsel %vm751, %v750, 0.0
        %756 = vadd.xlane.f32.xlu0 %v755
        %v757 = vpop.xlane.xlu0 %756
        %v758 = vadd.f32 %v754, 1.0
        %v759 = vadd.f32 %v757, 1.0
        %v760 = vrcp.pop %v758
        %v761 = vrcp.pop %v759
        %v762 = vmul.f32 %v749, %v760
        %v763 = vmul.f32 %v750, %v761
        %v764 = vpack.c.bf16 %v763, %v762
        %s765 = scalar_lea.vmem %s630, 8
        %v766 = vld [vmem:[%s765] sm:$0xf]
        %v767 = vld [vmem:[%s765 + $0x4] sm:$0xf]
        %v768 = vunpack.c.l.bf16 %v766
        %v769 = vunpack.c.l.bf16 %v767
        %v770 = vsel %vm751, %v768, 0.0
        %771 = vadd.xlane.f32.xlu0 %v770
        %v772 = vpop.xlane.xlu0 %771
        %v773 = vsel %vm751, %v769, 0.0
        %774 = vadd.xlane.f32.xlu0 %v773
        %v775 = vpop.xlane.xlu0 %774
        %v776 = vadd.f32 %v772, 1.0
        %v777 = vadd.f32 %v775, 1.0
        %v778 = vrcp.pop %v776
        %v779 = vrcp.pop %v777
        %v780 = vmul.f32 %v768, %v778
        %v781 = vmul.f32 %v769, %v779
        %v782 = vpack.c.bf16 %v781, %v780
        %v783 = vld [vmem:[%s8] sm:$0xf]
        %v784 = vld [vmem:[%s8 + $0x4] sm:$0xf]
        %v785 = vld [vmem:[%s8 + $0x8] sm:$0xf]
        %v786 = vld [vmem:[%s8 + $0xc] sm:$0xf]
        %v787 = vld [vmem:[%s8 + $0x10] sm:$0xf]
        %v788 = vld [vmem:[%s8 + $0x14] sm:$0xf]
        %v789 = vld [vmem:[%s8 + $0x18] sm:$0xf]
        %v790 = vld [vmem:[%s8 + $0x1c] sm:$0xf]
        %v791 = vld [vmem:[%s8 + $0x20] sm:$0xf]
        %v792 = vld [vmem:[%s8 + $0x24] sm:$0xf]
        %v793 = vld [vmem:[%s8 + $0x28] sm:$0xf]
        %v794 = vld [vmem:[%s8 + $0x2c] sm:$0xf]
        %v795 = vld [vmem:[%s8 + $0x30] sm:$0xf]
        %v796 = vld [vmem:[%s8 + $0x34] sm:$0xf]
        %v797 = vld [vmem:[%s8 + $0x38] sm:$0xf]
        %v798 = vld [vmem:[%s8 + $0x3c] sm:$0xf]
        %v815 = vunpack.c.l.b16 %v783
        %v816 = vunpack.c.l.b16 %v784
        %v817 = vunpack.c.l.b16 %v785
        %v818 = vunpack.c.l.b16 %v786
        %v819 = vunpack.c.l.b16 %v787
        %v820 = vunpack.c.l.b16 %v788
        %v821 = vunpack.c.l.b16 %v789
        %v822 = vunpack.c.l.b16 %v790
        %v823 = vunpack.c.l.b16 %v791
        %v824 = vunpack.c.l.b16 %v792
        %v825 = vunpack.c.l.b16 %v793
        %v826 = vunpack.c.l.b16 %v794
        %v827 = vunpack.c.l.b16 %v795
        %v828 = vunpack.c.l.b16 %v796
        %v829 = vunpack.c.l.b16 %v797
        %v830 = vunpack.c.l.b16 %v798
        %v831 = vpack.c.b16 %v816, %v815
        %v832 = vpack.c.b16 %v818, %v817
        %v833 = vpack.c.b16 %v820, %v819
        %v834 = vpack.c.b16 %v822, %v821
        %v835 = vpack.c.b16 %v824, %v823
        %v836 = vpack.c.b16 %v826, %v825
        %v837 = vpack.c.b16 %v828, %v827
        %v838 = vpack.c.b16 %v830, %v829
        %847 = vmatprep.subr.bf16.mxu0 0
        %848 = vmatpush1.bf16.msra.mxu0 %v831
        %849 = vmatprep.subr.bf16.mxu0 0
        %850 = vmatpush1.bf16.msra.mxu0 %v832
        %851 = vmatprep.subr.bf16.mxu0 0
        %852 = vmatpush1.bf16.msra.mxu0 %v833
        %853 = vmatprep.subr.bf16.mxu0 0
        %854 = vmatpush1.bf16.msra.mxu0 %v834
        %855 = vmatprep.subr.bf16.mxu0 0
        %856 = vmatpush1.bf16.msra.mxu0 %v835
        %857 = vmatprep.subr.bf16.mxu0 0
        %858 = vmatpush1.bf16.msra.mxu0 %v836
        %859 = vmatprep.subr.bf16.mxu0 0
        %860 = vmatpush1.bf16.msra.mxu0 %v837
        %861 = vmatprep.subr.bf16.mxu0 0
        %862 = vmatpush1.bf16.msra.mxu0 %v838
        %863 = vmatprep.subr.bf16.mxu0 0
        %864 = vmatpush1.bf16.msra.mxu0 0
        %865 = vmatprep.subr.bf16.mxu0 0
        %866 = vmatpush1.bf16.msra.mxu0 0
        %867 = vmatprep.subr.bf16.mxu0 0
        %868 = vmatpush1.bf16.msra.mxu0 0
        %869 = vmatprep.subr.bf16.mxu0 0
        %870 = vmatpush1.bf16.msra.mxu0 0
        %871 = vmatprep.subr.bf16.mxu0 0
        %872 = vmatpush1.bf16.msra.mxu0 0
        %873 = vmatprep.subr.bf16.mxu0 0
        %874 = vmatpush1.bf16.msra.mxu0 0
        %875 = vmatprep.subr.bf16.mxu0 0
        %876 = vmatpush1.bf16.msra.mxu0 0
        %877 = vmatprep.subr.bf16.mxu0 0
        %878 = vmatpush1.bf16.msra.mxu0 0
        %879 = vmatprep.mubr.bf16.mxu0 0
        %880 = vmatmul.mubr.bf16.gmra.mrb[0].mxu0 %v745
        %v881 = vpop.f32.mrb[0].mxu0
        %v882 = vadd.f32 0.0, %v881
        %v883 = vpop.f32.mrb[0].mxu0
        %v884 = vpop.f32.mrb[0].mxu0
        %v885 = vadd.f32 0.0, %v884
        %v886 = vpop.f32.mrb[0].mxu0
        %887 = vmatprep.mubr.bf16.mxu0 0
        %888 = vmatmul.mubr.bf16.gmra.mrb[0].mxu0 %v746
        %v889 = vpop.f32.mrb[0].mxu0
        %v890 = vadd.f32 0.0, %v889
        %v891 = vpop.f32.mrb[0].mxu0
        %v892 = vpop.f32.mrb[0].mxu0
        %v893 = vadd.f32 0.0, %v892
        %v894 = vpop.f32.mrb[0].mxu0
        %895 = vdwg.mxu0
        %v896 = vld [vmem:[%s9] sm:$0xf]
        %v897 = vld [vmem:[%s9 + $0x4] sm:$0xf]
        %v898 = vld [vmem:[%s9 + $0x8] sm:$0xf]
        %v899 = vld [vmem:[%s9 + $0xc] sm:$0xf]
        %v900 = vld [vmem:[%s9 + $0x10] sm:$0xf]
        %v901 = vld [vmem:[%s9 + $0x14] sm:$0xf]
        %v902 = vld [vmem:[%s9 + $0x18] sm:$0xf]
        %v903 = vld [vmem:[%s9 + $0x1c] sm:$0xf]
        %v904 = vld [vmem:[%s9 + $0x20] sm:$0xf]
        %v905 = vld [vmem:[%s9 + $0x24] sm:$0xf]
        %v906 = vld [vmem:[%s9 + $0x28] sm:$0xf]
        %v907 = vld [vmem:[%s9 + $0x2c] sm:$0xf]
        %v908 = vld [vmem:[%s9 + $0x30] sm:$0xf]
        %v909 = vld [vmem:[%s9 + $0x34] sm:$0xf]
        %v910 = vld [vmem:[%s9 + $0x38] sm:$0xf]
        %v911 = vld [vmem:[%s9 + $0x3c] sm:$0xf]
        %v928 = vunpack.c.l.b16 %v896
        %v929 = vunpack.c.l.b16 %v897
        %v930 = vunpack.c.l.b16 %v898
        %v931 = vunpack.c.l.b16 %v899
        %v932 = vunpack.c.l.b16 %v900
        %v933 = vunpack.c.l.b16 %v901
        %v934 = vunpack.c.l.b16 %v902
        %v935 = vunpack.c.l.b16 %v903
        %v936 = vunpack.c.l.b16 %v904
        %v937 = vunpack.c.l.b16 %v905
        %v938 = vunpack.c.l.b16 %v906
        %v939 = vunpack.c.l.b16 %v907
        %v940 = vunpack.c.l.b16 %v908
        %v941 = vunpack.c.l.b16 %v909
        %v942 = vunpack.c.l.b16 %v910
        %v943 = vunpack.c.l.b16 %v911
        %v944 = vpack.c.b16 %v929, %v928
        %v945 = vpack.c.b16 %v931, %v930
        %v946 = vpack.c.b16 %v933, %v932
        %v947 = vpack.c.b16 %v935, %v934
        %v948 = vpack.c.b16 %v937, %v936
        %v949 = vpack.c.b16 %v939, %v938
        %v950 = vpack.c.b16 %v941, %v940
        %v951 = vpack.c.b16 %v943, %v942
        %960 = vmatprep.subr.bf16.mxu0 0
        %961 = vmatpush1.bf16.msra.mxu0 %v944
        %962 = vmatprep.subr.bf16.mxu0 0
        %963 = vmatpush1.bf16.msra.mxu0 %v945
        %964 = vmatprep.subr.bf16.mxu0 0
        %965 = vmatpush1.bf16.msra.mxu0 %v946
        %966 = vmatprep.subr.bf16.mxu0 0
        %967 = vmatpush1.bf16.msra.mxu0 %v947
        %968 = vmatprep.subr.bf16.mxu0 0
        %969 = vmatpush1.bf16.msra.mxu0 %v948
        %970 = vmatprep.subr.bf16.mxu0 0
        %971 = vmatpush1.bf16.msra.mxu0 %v949
        %972 = vmatprep.subr.bf16.mxu0 0
        %973 = vmatpush1.bf16.msra.mxu0 %v950
        %974 = vmatprep.subr.bf16.mxu0 0
        %975 = vmatpush1.bf16.msra.mxu0 %v951
        %976 = vmatprep.subr.bf16.mxu0 0
        %977 = vmatpush1.bf16.msra.mxu0 0
        %978 = vmatprep.subr.bf16.mxu0 0
        %979 = vmatpush1.bf16.msra.mxu0 0
        %980 = vmatprep.subr.bf16.mxu0 0
        %981 = vmatpush1.bf16.msra.mxu0 0
        %982 = vmatprep.subr.bf16.mxu0 0
        %983 = vmatpush1.bf16.msra.mxu0 0
        %984 = vmatprep.subr.bf16.mxu0 0
        %985 = vmatpush1.bf16.msra.mxu0 0
        %986 = vmatprep.subr.bf16.mxu0 0
        %987 = vmatpush1.bf16.msra.mxu0 0
        %988 = vmatprep.subr.bf16.mxu0 0
        %989 = vmatpush1.bf16.msra.mxu0 0
        %990 = vmatprep.subr.bf16.mxu0 0
        %991 = vmatpush1.bf16.msra.mxu0 0
        %992 = vmatprep.mubr.bf16.mxu0 0
        %993 = vmatmul.mubr.bf16.gmra.mrb[0].mxu0 %v745
        %v994 = vpop.f32.mrb[0].mxu0
        %v995 = vadd.f32 0.0, %v994
        %v996 = vpop.f32.mrb[0].mxu0
        %v997 = vpop.f32.mrb[0].mxu0
        %v998 = vadd.f32 0.0, %v997
        %v999 = vpop.f32.mrb[0].mxu0
        %1000 = vmatprep.mubr.bf16.mxu0 0
        %1001 = vmatmul.mubr.bf16.gmra.mrb[0].mxu0 %v746
        %v1002 = vpop.f32.mrb[0].mxu0
        %v1003 = vadd.f32 0.0, %v1002
        %v1004 = vpop.f32.mrb[0].mxu0
        %v1005 = vpop.f32.mrb[0].mxu0
        %v1006 = vadd.f32 0.0, %v1005
        %v1007 = vpop.f32.mrb[0].mxu0
        %1008 = vdwg.mxu0
        %v1009 = vpack.c.bf16 %v885, %v882
        %v1010 = vpack.c.bf16 %v998, %v995
        %v1011 = vld [vmem:[%s616] sm:$0x1]
        %v1012 = vsub.f32 %v1011, 1.0
        %v1013 = vmul.f32 %v1012, 1e+30
        %v1015 = vlaneseq
        %v1016 = vshrl.u32 %v1015, 7
        %v1017 = vsub.s32 0, %v1016
        %v1018 = vrot.slane %v1013, %v1017
        %1020 = vmatprep.subr.bf16.mxu0 0
        %1021 = vmatpush1.bf16.xpose.msra.mxu0 %v1010
        %1022 = vmatprep.subr.bf16.mxu0 0
        %1023 = vmatpush1.bf16.xpose.msra.mxu0 0
        %1024 = vmatprep.subr.bf16.mxu0 0
        %1025 = vmatpush1.bf16.xpose.msra.mxu0 0
        %1026 = vmatprep.subr.bf16.mxu0 0
        %1027 = vmatpush1.bf16.xpose.msra.mxu0 0
        %1028 = vmatprep.subr.bf16.mxu0 0
        %1029 = vmatpush1.bf16.xpose.msra.mxu0 0
        %1030 = vmatprep.subr.bf16.mxu0 0
        %1031 = vmatpush1.bf16.xpose.msra.mxu0 0
        %1032 = vmatprep.subr.bf16.mxu0 0
        %1033 = vmatpush1.bf16.xpose.msra.mxu0 0
        %1034 = vmatprep.subr.bf16.mxu0 0
        %1035 = vmatpush1.bf16.xpose.msra.mxu0 0
        %1036 = vmatprep.subr.bf16.mxu0 0
        %1037 = vmatpush1.bf16.xpose.msra.mxu0 0
        %1038 = vmatprep.subr.bf16.mxu0 0
        %1039 = vmatpush1.bf16.xpose.msra.mxu0 0
        %1040 = vmatprep.subr.bf16.mxu0 0
        %1041 = vmatpush1.bf16.xpose.msra.mxu0 0
        %1042 = vmatprep.subr.bf16.mxu0 0
        %1043 = vmatpush1.bf16.xpose.msra.mxu0 0
        %1044 = vmatprep.subr.bf16.mxu0 0
        %1045 = vmatpush1.bf16.xpose.msra.mxu0 0
        %1046 = vmatprep.subr.bf16.mxu0 0
        %1047 = vmatpush1.bf16.xpose.msra.mxu0 0
        %1048 = vmatprep.subr.bf16.mxu0 0
        %1049 = vmatpush1.bf16.xpose.msra.mxu0 0
        %1050 = vmatprep.subr.bf16.mxu0 0
        %1051 = vmatpush1.bf16.xpose.msra.mxu0 0
        %1052 = vmatprep.mubr.bf16.mxu0 0
        %1053 = vmatmul.mubr.bf16.gmra.mrb[0].mxu0 %v1009
        %v1054 = vpop.f32.mrb[0].mxu0
        %v1055 = vadd.f32 %v1018, %v1054
        %v1056 = vpop.f32.mrb[0].mxu0
        %v1057 = vpop.f32.mrb[0].mxu0
        %v1058 = vadd.f32 %v1018, %v1057
        %v1059 = vpop.f32.mrb[0].mxu0
        %1060 = vdwg.mxu0
        %v1061 = vsel %vm751, %v1055, -inf
        %1062 = vmax.xlane.f32.xlu0 %v1061
        %v1063 = vpop.xlane.xlu0 %1062
        %v1064 = vsel %vm751, %v1058, -inf
        %1065 = vmax.xlane.f32.xlu0 %v1064
        %v1066 = vpop.xlane.xlu0 %1065
        %v1067 = vsub.f32 %v1055, %v1063
        %v1068 = vsub.f32 %v1058, %v1066
        %v1069 = vmul.f32 %v1067, 1.442695
        %v1070 = vpow.pop %v1069
        %v1071 = vmul.f32 %v1068, 1.442695
        %v1072 = vpow.pop %v1071
        %v1073 = vsel %vm751, %v1070, 0.0
        %1074 = vadd.xlane.f32.xlu0 %v1073
        %v1075 = vpop.xlane.xlu0 %1074
        %v1076 = vsel %vm751, %v1072, 0.0
        %1077 = vadd.xlane.f32.xlu0 %v1076
        %v1078 = vpop.xlane.xlu0 %1077
        %v1079 = vrcp.pop %v1075
        %v1080 = vmul.f32 %v1070, %v1079
        %v1081 = vrcp.pop %v1078
        %v1082 = vmul.f32 %v1072, %v1081
        %v1083 = vld [vmem:[%s623] sm:$0xff]
        %v1084 = vld [vmem:[%s623 + $0x8] sm:$0xff]
        %1086 = vset.pattern.permute.xlu0 0
        %1087 = vperm.xlu0 %1086, %v1083
        %v1088 = vpop.permute.xlu0 %1087
        %1091 = vset.pattern.permute.xlu0 0
        %1092 = vperm.xlu0 %1091, %v1084
        %v1093 = vpop.permute.xlu0 %1092
        %v1095 = vmul.f32 %v1080, %v1088
        %v1096 = vmul.f32 %v1082, %v1093
        %v1097 = vsel %vm751, %v1095, 0.0
        %1098 = vadd.xlane.f32.xlu0 %v1097
        %v1099 = vpop.xlane.xlu0 %1098
        %v1100 = vsel %vm751, %v1096, 0.0
        %1101 = vadd.xlane.f32.xlu0 %v1100
        %v1102 = vpop.xlane.xlu0 %1101
        %v1103 = vadd.f32 %v1099, 1.0
        %v1104 = vadd.f32 %v1102, 1.0
        %v1105 = vrcp.pop %v1103
        %v1106 = vrcp.pop %v1104
        %v1107 = vmul.f32 %v1095, %v1105
        %v1108 = vmul.f32 %v1096, %v1106
        %v1109 = vpack.c.bf16 %v1108, %v1107
        %v1110 = vpack.c.bf16 %v893, %v890
        %v1111 = vpack.c.bf16 %v1006, %v1003
        %s1112 = scalar_lea.vmem %s616, 1
        %v1113 = vld [vmem:[%s1112] sm:$0x1]
        %v1114 = vsub.f32 %v1113, 1.0
        %v1115 = vmul.f32 %v1114, 1e+30
        %v1117 = vlaneseq
        %v1118 = vshrl.u32 %v1117, 7
        %v1119 = vsub.s32 0, %v1118
        %v1120 = vrot.slane %v1115, %v1119
        %1122 = vmatprep.subr.bf16.mxu0 0
        %1123 = vmatpush1.bf16.xpose.msra.mxu0 %v1111
        %1124 = vmatprep.subr.bf16.mxu0 0
        %1125 = vmatpush1.bf16.xpose.msra.mxu0 0
        %1126 = vmatprep.subr.bf16.mxu0 0
        %1127 = vmatpush1.bf16.xpose.msra.mxu0 0
        %1128 = vmatprep.subr.bf16.mxu0 0
        %1129 = vmatpush1.bf16.xpose.msra.mxu0 0
        %1130 = vmatprep.subr.bf16.mxu0 0
        %1131 = vmatpush1.bf16.xpose.msra.mxu0 0
        %1132 = vmatprep.subr.bf16.mxu0 0
        %1133 = vmatpush1.bf16.xpose.msra.mxu0 0
        %1134 = vmatprep.subr.bf16.mxu0 0
        %1135 = vmatpush1.bf16.xpose.msra.mxu0 0
        %1136 = vmatprep.subr.bf16.mxu0 0
        %1137 = vmatpush1.bf16.xpose.msra.mxu0 0
        %1138 = vmatprep.subr.bf16.mxu0 0
        %1139 = vmatpush1.bf16.xpose.msra.mxu0 0
        %1140 = vmatprep.subr.bf16.mxu0 0
        %1141 = vmatpush1.bf16.xpose.msra.mxu0 0
        %1142 = vmatprep.subr.bf16.mxu0 0
        %1143 = vmatpush1.bf16.xpose.msra.mxu0 0
        %1144 = vmatprep.subr.bf16.mxu0 0
        %1145 = vmatpush1.bf16.xpose.msra.mxu0 0
        %1146 = vmatprep.subr.bf16.mxu0 0
        %1147 = vmatpush1.bf16.xpose.msra.mxu0 0
        %1148 = vmatprep.subr.bf16.mxu0 0
        %1149 = vmatpush1.bf16.xpose.msra.mxu0 0
        %1150 = vmatprep.subr.bf16.mxu0 0
        %1151 = vmatpush1.bf16.xpose.msra.mxu0 0
        %1152 = vmatprep.subr.bf16.mxu0 0
        %1153 = vmatpush1.bf16.xpose.msra.mxu0 0
        %1154 = vmatprep.mubr.bf16.mxu0 0
        %1155 = vmatmul.mubr.bf16.gmra.mrb[0].mxu0 %v1110
        %v1156 = vpop.f32.mrb[0].mxu0
        %v1157 = vadd.f32 %v1120, %v1156
        %v1158 = vpop.f32.mrb[0].mxu0
        %v1159 = vpop.f32.mrb[0].mxu0
        %v1160 = vadd.f32 %v1120, %v1159
        %v1161 = vpop.f32.mrb[0].mxu0
        %1162 = vdwg.mxu0
        %v1163 = vsel %vm751, %v1157, -inf
        %1164 = vmax.xlane.f32.xlu0 %v1163
        %v1165 = vpop.xlane.xlu0 %1164
        %v1166 = vsel %vm751, %v1160, -inf
        %1167 = vmax.xlane.f32.xlu0 %v1166
        %v1168 = vpop.xlane.xlu0 %1167
        %v1169 = vsub.f32 %v1157, %v1165
        %v1170 = vsub.f32 %v1160, %v1168
        %v1171 = vmul.f32 %v1169, 1.442695
        %v1172 = vpow.pop %v1171
        %v1173 = vmul.f32 %v1170, 1.442695
        %v1174 = vpow.pop %v1173
        %v1175 = vsel %vm751, %v1172, 0.0
        %1176 = vadd.xlane.f32.xlu0 %v1175
        %v1177 = vpop.xlane.xlu0 %1176
        %v1178 = vsel %vm751, %v1174, 0.0
        %1179 = vadd.xlane.f32.xlu0 %v1178
        %v1180 = vpop.xlane.xlu0 %1179
        %v1181 = vrcp.pop %v1177
        %v1182 = vmul.f32 %v1172, %v1181
        %v1183 = vrcp.pop %v1180
        %v1184 = vmul.f32 %v1174, %v1183
        %s1185 = scalar_lea.vmem %s623, 16
        %v1186 = vld [vmem:[%s1185] sm:$0xff]
        %v1187 = vld [vmem:[%s1185 + $0x8] sm:$0xff]
        %1189 = vset.pattern.permute.xlu0 0
        %1190 = vperm.xlu0 %1189, %v1186
        %v1191 = vpop.permute.xlu0 %1190
        %1194 = vset.pattern.permute.xlu0 0
        %1195 = vperm.xlu0 %1194, %v1187
        %v1196 = vpop.permute.xlu0 %1195
        %v1198 = vmul.f32 %v1182, %v1191
        %v1199 = vmul.f32 %v1184, %v1196
        %v1200 = vsel %vm751, %v1198, 0.0
        %1201 = vadd.xlane.f32.xlu0 %v1200
        %v1202 = vpop.xlane.xlu0 %1201
        %v1203 = vsel %vm751, %v1199, 0.0
        %1204 = vadd.xlane.f32.xlu0 %v1203
        %v1205 = vpop.xlane.xlu0 %1204
        %v1206 = vadd.f32 %v1202, 1.0
        %v1207 = vadd.f32 %v1205, 1.0
        %v1208 = vrcp.pop %v1206
        %v1209 = vrcp.pop %v1207
        %v1210 = vmul.f32 %v1198, %v1208
        %v1211 = vmul.f32 %v1199, %v1209
        %v1212 = vpack.c.bf16 %v1211, %v1210
        %v1214 = vsel %vm751, %v764, 0
        %1216 = vmatprep.subr.bf16.mxu0 0
        %1217 = vmatpush1.bf16.msra.mxu0 %v745
        %1218 = vmatprep.subr.bf16.mxu0 0
        %1219 = vmatpush1.bf16.msra.mxu0 0
        %1220 = vmatprep.subr.bf16.mxu0 0
        %1221 = vmatpush1.bf16.msra.mxu0 0
        %1222 = vmatprep.subr.bf16.mxu0 0
        %1223 = vmatpush1.bf16.msra.mxu0 0
        %1224 = vmatprep.subr.bf16.mxu0 0
        %1225 = vmatpush1.bf16.msra.mxu0 0
        %1226 = vmatprep.subr.bf16.mxu0 0
        %1227 = vmatpush1.bf16.msra.mxu0 0
        %1228 = vmatprep.subr.bf16.mxu0 0
        %1229 = vmatpush1.bf16.msra.mxu0 0
        %1230 = vmatprep.subr.bf16.mxu0 0
        %1231 = vmatpush1.bf16.msra.mxu0 0
        %1232 = vmatprep.subr.bf16.mxu0 0
        %1233 = vmatpush1.bf16.msra.mxu0 0
        %1234 = vmatprep.subr.bf16.mxu0 0
        %1235 = vmatpush1.bf16.msra.mxu0 0
        %1236 = vmatprep.subr.bf16.mxu0 0
        %1237 = vmatpush1.bf16.msra.mxu0 0
        %1238 = vmatprep.subr.bf16.mxu0 0
        %1239 = vmatpush1.bf16.msra.mxu0 0
        %1240 = vmatprep.subr.bf16.mxu0 0
        %1241 = vmatpush1.bf16.msra.mxu0 0
        %1242 = vmatprep.subr.bf16.mxu0 0
        %1243 = vmatpush1.bf16.msra.mxu0 0
        %1244 = vmatprep.subr.bf16.mxu0 0
        %1245 = vmatpush1.bf16.msra.mxu0 0
        %1246 = vmatprep.subr.bf16.mxu0 0
        %1247 = vmatpush1.bf16.msra.mxu0 0
        %1248 = vmatprep.mubr.bf16.mxu0 0
        %1249 = vmatmul.mubr.bf16.gmra.mrb[0].mxu0 %v1214
        %v1250 = vpop.f32.mrb[0].mxu0
        %v1251 = vadd.f32 0.0, %v1250
        %v1252 = vpop.f32.mrb[0].mxu0
        %v1253 = vpop.f32.mrb[0].mxu0
        %v1254 = vadd.f32 0.0, %v1253
        %v1255 = vpop.f32.mrb[0].mxu0
        %1256 = vdwg.mxu0
        %v1258 = vsel %vm751, %v782, 0
        %1260 = vmatprep.subr.bf16.mxu0 0
        %1261 = vmatpush1.bf16.msra.mxu0 %v746
        %1262 = vmatprep.subr.bf16.mxu0 0
        %1263 = vmatpush1.bf16.msra.mxu0 0
        %1264 = vmatprep.subr.bf16.mxu0 0
        %1265 = vmatpush1.bf16.msra.mxu0 0
        %1266 = vmatprep.subr.bf16.mxu0 0
        %1267 = vmatpush1.bf16.msra.mxu0 0
        %1268 = vmatprep.subr.bf16.mxu0 0
        %1269 = vmatpush1.bf16.msra.mxu0 0
        %1270 = vmatprep.subr.bf16.mxu0 0
        %1271 = vmatpush1.bf16.msra.mxu0 0
        %1272 = vmatprep.subr.bf16.mxu0 0
        %1273 = vmatpush1.bf16.msra.mxu0 0
        %1274 = vmatprep.subr.bf16.mxu0 0
        %1275 = vmatpush1.bf16.msra.mxu0 0
        %1276 = vmatprep.subr.bf16.mxu0 0
        %1277 = vmatpush1.bf16.msra.mxu0 0
        %1278 = vmatprep.subr.bf16.mxu0 0
        %1279 = vmatpush1.bf16.msra.mxu0 0
        %1280 = vmatprep.subr.bf16.mxu0 0
        %1281 = vmatpush1.bf16.msra.mxu0 0
        %1282 = vmatprep.subr.bf16.mxu0 0
        %1283 = vmatpush1.bf16.msra.mxu0 0
        %1284 = vmatprep.subr.bf16.mxu0 0
        %1285 = vmatpush1.bf16.msra.mxu0 0
        %1286 = vmatprep.subr.bf16.mxu0 0
        %1287 = vmatpush1.bf16.msra.mxu0 0
        %1288 = vmatprep.subr.bf16.mxu0 0
        %1289 = vmatpush1.bf16.msra.mxu0 0
        %1290 = vmatprep.subr.bf16.mxu0 0
        %1291 = vmatpush1.bf16.msra.mxu0 0
        %1292 = vmatprep.mubr.bf16.mxu0 0
        %1293 = vmatmul.mubr.bf16.gmra.mrb[0].mxu0 %v1258
        %v1294 = vpop.f32.mrb[0].mxu0
        %v1295 = vadd.f32 0.0, %v1294
        %v1296 = vpop.f32.mrb[0].mxu0
        %v1297 = vpop.f32.mrb[0].mxu0
        %v1298 = vadd.f32 0.0, %v1297
        %v1299 = vpop.f32.mrb[0].mxu0
        %1300 = vdwg.mxu0
        %v1301 = vpack.c.bf16 %v1254, %v1251
        %v1302 = vpack.c.bf16 %v1298, %v1295
        %v1303 = vld [vmem:[%s6] sm:$0xf]
        %v1304 = vld [vmem:[%s6 + $0x4] sm:$0xf]
        %v1305 = vld [vmem:[%s6 + $0x8] sm:$0xf]
        %v1306 = vld [vmem:[%s6 + $0xc] sm:$0xf]
        %v1307 = vld [vmem:[%s6 + $0x10] sm:$0xf]
        %v1308 = vld [vmem:[%s6 + $0x14] sm:$0xf]
        %v1309 = vld [vmem:[%s6 + $0x18] sm:$0xf]
        %v1310 = vld [vmem:[%s6 + $0x1c] sm:$0xf]
        %v1311 = vld [vmem:[%s6 + $0x20] sm:$0xf]
        %v1312 = vld [vmem:[%s6 + $0x24] sm:$0xf]
        %v1313 = vld [vmem:[%s6 + $0x28] sm:$0xf]
        %v1314 = vld [vmem:[%s6 + $0x2c] sm:$0xf]
        %v1315 = vld [vmem:[%s6 + $0x30] sm:$0xf]
        %v1316 = vld [vmem:[%s6 + $0x34] sm:$0xf]
        %v1317 = vld [vmem:[%s6 + $0x38] sm:$0xf]
        %v1318 = vld [vmem:[%s6 + $0x3c] sm:$0xf]
        %v1319 = vld [vmem:[%s7] sm:$0x1]
        %v1321 = vlaneseq
        %v1322 = vshrl.u32 %v1321, 7
        %v1323 = vsub.s32 0, %v1322
        %v1324 = vrot.slane %v1319, %v1323
        %v1342 = vunpack.c.l.b16 %v1303
        %v1343 = vunpack.c.l.b16 %v1304
        %v1344 = vunpack.c.l.b16 %v1305
        %v1345 = vunpack.c.l.b16 %v1306
        %v1346 = vunpack.c.l.b16 %v1307
        %v1347 = vunpack.c.l.b16 %v1308
        %v1348 = vunpack.c.l.b16 %v1309
        %v1349 = vunpack.c.l.b16 %v1310
        %v1350 = vunpack.c.l.b16 %v1311
        %v1351 = vunpack.c.l.b16 %v1312
        %v1352 = vunpack.c.l.b16 %v1313
        %v1353 = vunpack.c.l.b16 %v1314
        %v1354 = vunpack.c.l.b16 %v1315
        %v1355 = vunpack.c.l.b16 %v1316
        %v1356 = vunpack.c.l.b16 %v1317
        %v1357 = vunpack.c.l.b16 %v1318
        %v1358 = vpack.c.b16 %v1343, %v1342
        %v1359 = vpack.c.b16 %v1345, %v1344
        %v1360 = vpack.c.b16 %v1347, %v1346
        %v1361 = vpack.c.b16 %v1349, %v1348
        %v1362 = vpack.c.b16 %v1351, %v1350
        %v1363 = vpack.c.b16 %v1353, %v1352
        %v1364 = vpack.c.b16 %v1355, %v1354
        %v1365 = vpack.c.b16 %v1357, %v1356
        %1374 = vmatprep.subr.bf16.mxu0 0
        %1375 = vmatpush1.bf16.msra.mxu0 %v1358
        %1376 = vmatprep.subr.bf16.mxu0 0
        %1377 = vmatpush1.bf16.msra.mxu0 %v1359
        %1378 = vmatprep.subr.bf16.mxu0 0
        %1379 = vmatpush1.bf16.msra.mxu0 %v1360
        %1380 = vmatprep.subr.bf16.mxu0 0
        %1381 = vmatpush1.bf16.msra.mxu0 %v1361
        %1382 = vmatprep.subr.bf16.mxu0 0
        %1383 = vmatpush1.bf16.msra.mxu0 %v1362
        %1384 = vmatprep.subr.bf16.mxu0 0
        %1385 = vmatpush1.bf16.msra.mxu0 %v1363
        %1386 = vmatprep.subr.bf16.mxu0 0
        %1387 = vmatpush1.bf16.msra.mxu0 %v1364
        %1388 = vmatprep.subr.bf16.mxu0 0
        %1389 = vmatpush1.bf16.msra.mxu0 %v1365
        %1390 = vmatprep.subr.bf16.mxu0 0
        %1391 = vmatpush1.bf16.msra.mxu0 0
        %1392 = vmatprep.subr.bf16.mxu0 0
        %1393 = vmatpush1.bf16.msra.mxu0 0
        %1394 = vmatprep.subr.bf16.mxu0 0
        %1395 = vmatpush1.bf16.msra.mxu0 0
        %1396 = vmatprep.subr.bf16.mxu0 0
        %1397 = vmatpush1.bf16.msra.mxu0 0
        %1398 = vmatprep.subr.bf16.mxu0 0
        %1399 = vmatpush1.bf16.msra.mxu0 0
        %1400 = vmatprep.subr.bf16.mxu0 0
        %1401 = vmatpush1.bf16.msra.mxu0 0
        %1402 = vmatprep.subr.bf16.mxu0 0
        %1403 = vmatpush1.bf16.msra.mxu0 0
        %1404 = vmatprep.subr.bf16.mxu0 0
        %1405 = vmatpush1.bf16.msra.mxu0 0
        %1406 = vmatprep.mubr.bf16.mxu0 0
        %1407 = vmatmul.mubr.bf16.gmra.mrb[0].mxu0 %v1301
        %v1408 = vpop.f32.mrb[0].mxu0
        %v1409 = vadd.f32 %v1324, %v1408
        %v1410 = vpop.f32.mrb[0].mxu0
        %v1411 = vpop.f32.mrb[0].mxu0
        %v1412 = vadd.f32 %v1324, %v1411
        %v1413 = vpop.f32.mrb[0].mxu0
        %1414 = vmatprep.mubr.bf16.mxu0 0
        %1415 = vmatmul.mubr.bf16.gmra.mrb[0].mxu0 %v1302
        %v1416 = vpop.f32.mrb[0].mxu0
        %v1417 = vadd.f32 %v1324, %v1416
        %v1418 = vpop.f32.mrb[0].mxu0
        %v1419 = vpop.f32.mrb[0].mxu0
        %v1420 = vadd.f32 %v1324, %v1419
        %v1421 = vpop.f32.mrb[0].mxu0
        %1422 = vdwg.mxu0
        %v1423 = vmax.f32 %v1409, 0.0
        %v1424 = vmax.f32 %v1412, 0.0
        %v1425 = vmax.f32 %v1417, 0.0
        %v1426 = vmax.f32 %v1420, 0.0
        %v1427 = vpack.c.bf16 %v1424, %v1423
        %v1428 = vpack.c.bf16 %v1426, %v1425
        %1429 = vmatprep.subr.bf16.mxu0 0
        %1430 = vmatpush1.bf16.msra.mxu0 %v1427
        %1431 = vmatprep.subr.bf16.mxu0 0
        %1432 = vmatpush1.bf16.msra.mxu0 0
        %1433 = vmatprep.subr.bf16.mxu0 0
        %1434 = vmatpush1.bf16.msra.mxu0 0
        %1435 = vmatprep.subr.bf16.mxu0 0
        %1436 = vmatpush1.bf16.msra.mxu0 0
        %1437 = vmatprep.subr.bf16.mxu0 0
        %1438 = vmatpush1.bf16.msra.mxu0 0
        %1439 = vmatprep.subr.bf16.mxu0 0
        %1440 = vmatpush1.bf16.msra.mxu0 0
        %1441 = vmatprep.subr.bf16.mxu0 0
        %1442 = vmatpush1.bf16.msra.mxu0 0
        %1443 = vmatprep.subr.bf16.mxu0 0
        %1444 = vmatpush1.bf16.msra.mxu0 0
        %1445 = vmatprep.subr.bf16.mxu0 0
        %1446 = vmatpush1.bf16.msra.mxu0 0
        %1447 = vmatprep.subr.bf16.mxu0 0
        %1448 = vmatpush1.bf16.msra.mxu0 0
        %1449 = vmatprep.subr.bf16.mxu0 0
        %1450 = vmatpush1.bf16.msra.mxu0 0
        %1451 = vmatprep.subr.bf16.mxu0 0
        %1452 = vmatpush1.bf16.msra.mxu0 0
        %1453 = vmatprep.subr.bf16.mxu0 0
        %1454 = vmatpush1.bf16.msra.mxu0 0
        %1455 = vmatprep.subr.bf16.mxu0 0
        %1456 = vmatpush1.bf16.msra.mxu0 0
        %1457 = vmatprep.subr.bf16.mxu0 0
        %1458 = vmatpush1.bf16.msra.mxu0 0
        %1459 = vmatprep.subr.bf16.mxu0 0
        %1460 = vmatpush1.bf16.msra.mxu0 0
        %1461 = vmatprep.mubr.bf16.mxu0 0
        %1462 = vmatmul.mubr.bf16.gmra.mrb[0].mxu0 %v1214
        %v1463 = vpop.f32.mrb[0].mxu0
        %v1464 = vadd.f32 0.0, %v1463
        %v1465 = vpop.f32.mrb[0].mxu0
        %v1466 = vpop.f32.mrb[0].mxu0
        %v1467 = vadd.f32 0.0, %v1466
        %v1468 = vpop.f32.mrb[0].mxu0
        %1469 = vdwg.mxu0
        %1470 = vmatprep.subr.bf16.mxu0 0
        %1471 = vmatpush1.bf16.msra.mxu0 %v1428
        %1472 = vmatprep.subr.bf16.mxu0 0
        %1473 = vmatpush1.bf16.msra.mxu0 0
        %1474 = vmatprep.subr.bf16.mxu0 0
        %1475 = vmatpush1.bf16.msra.mxu0 0
        %1476 = vmatprep.subr.bf16.mxu0 0
        %1477 = vmatpush1.bf16.msra.mxu0 0
        %1478 = vmatprep.subr.bf16.mxu0 0
        %1479 = vmatpush1.bf16.msra.mxu0 0
        %1480 = vmatprep.subr.bf16.mxu0 0
        %1481 = vmatpush1.bf16.msra.mxu0 0
        %1482 = vmatprep.subr.bf16.mxu0 0
        %1483 = vmatpush1.bf16.msra.mxu0 0
        %1484 = vmatprep.subr.bf16.mxu0 0
        %1485 = vmatpush1.bf16.msra.mxu0 0
        %1486 = vmatprep.subr.bf16.mxu0 0
        %1487 = vmatpush1.bf16.msra.mxu0 0
        %1488 = vmatprep.subr.bf16.mxu0 0
        %1489 = vmatpush1.bf16.msra.mxu0 0
        %1490 = vmatprep.subr.bf16.mxu0 0
        %1491 = vmatpush1.bf16.msra.mxu0 0
        %1492 = vmatprep.subr.bf16.mxu0 0
        %1493 = vmatpush1.bf16.msra.mxu0 0
        %1494 = vmatprep.subr.bf16.mxu0 0
        %1495 = vmatpush1.bf16.msra.mxu0 0
        %1496 = vmatprep.subr.bf16.mxu0 0
        %1497 = vmatpush1.bf16.msra.mxu0 0
        %1498 = vmatprep.subr.bf16.mxu0 0
        %1499 = vmatpush1.bf16.msra.mxu0 0
        %1500 = vmatprep.subr.bf16.mxu0 0
        %1501 = vmatpush1.bf16.msra.mxu0 0
        %1502 = vmatprep.mubr.bf16.mxu0 0
        %1503 = vmatmul.mubr.bf16.gmra.mrb[0].mxu0 %v1258
        %v1504 = vpop.f32.mrb[0].mxu0
        %v1505 = vadd.f32 0.0, %v1504
        %v1506 = vpop.f32.mrb[0].mxu0
        %v1507 = vpop.f32.mrb[0].mxu0
        %v1508 = vadd.f32 0.0, %v1507
        %v1509 = vpop.f32.mrb[0].mxu0
        %1510 = vdwg.mxu0
        %v1511 = vpack.c.bf16 %v1467, %v1464
        %v1512 = vpack.c.bf16 %v1508, %v1505
        %s1513 = scalar_lea.vmem %s6, 64
        %v1514 = vld [vmem:[%s1513] sm:$0xf]
        %v1515 = vld [vmem:[%s1513 + $0x4] sm:$0xf]
        %v1516 = vld [vmem:[%s1513 + $0x8] sm:$0xf]
        %v1517 = vld [vmem:[%s1513 + $0xc] sm:$0xf]
        %v1518 = vld [vmem:[%s1513 + $0x10] sm:$0xf]
        %v1519 = vld [vmem:[%s1513 + $0x14] sm:$0xf]
        %v1520 = vld [vmem:[%s1513 + $0x18] sm:$0xf]
        %v1521 = vld [vmem:[%s1513 + $0x1c] sm:$0xf]
        %v1522 = vld [vmem:[%s1513 + $0x20] sm:$0xf]
        %v1523 = vld [vmem:[%s1513 + $0x24] sm:$0xf]
        %v1524 = vld [vmem:[%s1513 + $0x28] sm:$0xf]
        %v1525 = vld [vmem:[%s1513 + $0x2c] sm:$0xf]
        %v1526 = vld [vmem:[%s1513 + $0x30] sm:$0xf]
        %v1527 = vld [vmem:[%s1513 + $0x34] sm:$0xf]
        %v1528 = vld [vmem:[%s1513 + $0x38] sm:$0xf]
        %v1529 = vld [vmem:[%s1513 + $0x3c] sm:$0xf]
        %s1530 = scalar_lea.vmem %s7, 1
        %v1531 = vld [vmem:[%s1530] sm:$0x1]
        %v1533 = vlaneseq
        %v1534 = vshrl.u32 %v1533, 7
        %v1535 = vsub.s32 0, %v1534
        %v1536 = vrot.slane %v1531, %v1535
        %v1554 = vunpack.c.l.b16 %v1514
        %v1555 = vunpack.c.l.b16 %v1515
        %v1556 = vunpack.c.l.b16 %v1516
        %v1557 = vunpack.c.l.b16 %v1517
        %v1558 = vunpack.c.l.b16 %v1518
        %v1559 = vunpack.c.l.b16 %v1519
        %v1560 = vunpack.c.l.b16 %v1520
        %v1561 = vunpack.c.l.b16 %v1521
        %v1562 = vunpack.c.l.b16 %v1522
        %v1563 = vunpack.c.l.b16 %v1523
        %v1564 = vunpack.c.l.b16 %v1524
        %v1565 = vunpack.c.l.b16 %v1525
        %v1566 = vunpack.c.l.b16 %v1526
        %v1567 = vunpack.c.l.b16 %v1527
        %v1568 = vunpack.c.l.b16 %v1528
        %v1569 = vunpack.c.l.b16 %v1529
        %v1570 = vpack.c.b16 %v1555, %v1554
        %v1571 = vpack.c.b16 %v1557, %v1556
        %v1572 = vpack.c.b16 %v1559, %v1558
        %v1573 = vpack.c.b16 %v1561, %v1560
        %v1574 = vpack.c.b16 %v1563, %v1562
        %v1575 = vpack.c.b16 %v1565, %v1564
        %v1576 = vpack.c.b16 %v1567, %v1566
        %v1577 = vpack.c.b16 %v1569, %v1568
        %1586 = vmatprep.subr.bf16.mxu0 0
        %1587 = vmatpush1.bf16.msra.mxu0 %v1570
        %1588 = vmatprep.subr.bf16.mxu0 0
        %1589 = vmatpush1.bf16.msra.mxu0 %v1571
        %1590 = vmatprep.subr.bf16.mxu0 0
        %1591 = vmatpush1.bf16.msra.mxu0 %v1572
        %1592 = vmatprep.subr.bf16.mxu0 0
        %1593 = vmatpush1.bf16.msra.mxu0 %v1573
        %1594 = vmatprep.subr.bf16.mxu0 0
        %1595 = vmatpush1.bf16.msra.mxu0 %v1574
        %1596 = vmatprep.subr.bf16.mxu0 0
        %1597 = vmatpush1.bf16.msra.mxu0 %v1575
        %1598 = vmatprep.subr.bf16.mxu0 0
        %1599 = vmatpush1.bf16.msra.mxu0 %v1576
        %1600 = vmatprep.subr.bf16.mxu0 0
        %1601 = vmatpush1.bf16.msra.mxu0 %v1577
        %1602 = vmatprep.subr.bf16.mxu0 0
        %1603 = vmatpush1.bf16.msra.mxu0 0
        %1604 = vmatprep.subr.bf16.mxu0 0
        %1605 = vmatpush1.bf16.msra.mxu0 0
        %1606 = vmatprep.subr.bf16.mxu0 0
        %1607 = vmatpush1.bf16.msra.mxu0 0
        %1608 = vmatprep.subr.bf16.mxu0 0
        %1609 = vmatpush1.bf16.msra.mxu0 0
        %1610 = vmatprep.subr.bf16.mxu0 0
        %1611 = vmatpush1.bf16.msra.mxu0 0
        %1612 = vmatprep.subr.bf16.mxu0 0
        %1613 = vmatpush1.bf16.msra.mxu0 0
        %1614 = vmatprep.subr.bf16.mxu0 0
        %1615 = vmatpush1.bf16.msra.mxu0 0
        %1616 = vmatprep.subr.bf16.mxu0 0
        %1617 = vmatpush1.bf16.msra.mxu0 0
        %1618 = vmatprep.mubr.bf16.mxu0 0
        %1619 = vmatmul.mubr.bf16.gmra.mrb[0].mxu0 %v1511
        %v1620 = vpop.f32.mrb[0].mxu0
        %v1621 = vadd.f32 %v1536, %v1620
        %v1622 = vpop.f32.mrb[0].mxu0
        %v1623 = vpop.f32.mrb[0].mxu0
        %v1624 = vadd.f32 %v1536, %v1623
        %v1625 = vpop.f32.mrb[0].mxu0
        %1626 = vmatprep.mubr.bf16.mxu0 0
        %1627 = vmatmul.mubr.bf16.gmra.mrb[0].mxu0 %v1512
        %v1628 = vpop.f32.mrb[0].mxu0
        %v1629 = vadd.f32 %v1536, %v1628
        %v1630 = vpop.f32.mrb[0].mxu0
        %v1631 = vpop.f32.mrb[0].mxu0
        %v1632 = vadd.f32 %v1536, %v1631
        %v1633 = vpop.f32.mrb[0].mxu0
        %1634 = vdwg.mxu0
        %v1635 = vmax.f32 %v1621, 0.0
        %v1636 = vmax.f32 %v1624, 0.0
        %v1637 = vmax.f32 %v1629, 0.0
        %v1638 = vmax.f32 %v1632, 0.0
        %v1640 = vsel %vm751, %v1109, 0
        %1642 = vmatprep.subr.bf16.mxu0 0
        %1643 = vmatpush1.bf16.msra.mxu0 %v745
        %1644 = vmatprep.subr.bf16.mxu0 0
        %1645 = vmatpush1.bf16.msra.mxu0 0
        %1646 = vmatprep.subr.bf16.mxu0 0
        %1647 = vmatpush1.bf16.msra.mxu0 0
        %1648 = vmatprep.subr.bf16.mxu0 0
        %1649 = vmatpush1.bf16.msra.mxu0 0
        %1650 = vmatprep.subr.bf16.mxu0 0
        %1651 = vmatpush1.bf16.msra.mxu0 0
        %1652 = vmatprep.subr.bf16.mxu0 0
        %1653 = vmatpush1.bf16.msra.mxu0 0
        %1654 = vmatprep.subr.bf16.mxu0 0
        %1655 = vmatpush1.bf16.msra.mxu0 0
        %1656 = vmatprep.subr.bf16.mxu0 0
        %1657 = vmatpush1.bf16.msra.mxu0 0
        %1658 = vmatprep.subr.bf16.mxu0 0
        %1659 = vmatpush1.bf16.msra.mxu0 0
        %1660 = vmatprep.subr.bf16.mxu0 0
        %1661 = vmatpush1.bf16.msra.mxu0 0
        %1662 = vmatprep.subr.bf16.mxu0 0
        %1663 = vmatpush1.bf16.msra.mxu0 0
        %1664 = vmatprep.subr.bf16.mxu0 0
        %1665 = vmatpush1.bf16.msra.mxu0 0
        %1666 = vmatprep.subr.bf16.mxu0 0
        %1667 = vmatpush1.bf16.msra.mxu0 0
        %1668 = vmatprep.subr.bf16.mxu0 0
        %1669 = vmatpush1.bf16.msra.mxu0 0
        %1670 = vmatprep.subr.bf16.mxu0 0
        %1671 = vmatpush1.bf16.msra.mxu0 0
        %1672 = vmatprep.subr.bf16.mxu0 0
        %1673 = vmatpush1.bf16.msra.mxu0 0
        %1674 = vmatprep.mubr.bf16.mxu0 0
        %1675 = vmatmul.mubr.bf16.gmra.mrb[0].mxu0 %v1640
        %v1676 = vpop.f32.mrb[0].mxu0
        %v1677 = vadd.f32 0.0, %v1676
        %v1678 = vpop.f32.mrb[0].mxu0
        %v1679 = vpop.f32.mrb[0].mxu0
        %v1680 = vadd.f32 0.0, %v1679
        %v1681 = vpop.f32.mrb[0].mxu0
        %1682 = vdwg.mxu0
        %v1684 = vsel %vm751, %v1212, 0
        %1686 = vmatprep.subr.bf16.mxu0 0
        %1687 = vmatpush1.bf16.msra.mxu0 %v746
        %1688 = vmatprep.subr.bf16.mxu0 0
        %1689 = vmatpush1.bf16.msra.mxu0 0
        %1690 = vmatprep.subr.bf16.mxu0 0
        %1691 = vmatpush1.bf16.msra.mxu0 0
        %1692 = vmatprep.subr.bf16.mxu0 0
        %1693 = vmatpush1.bf16.msra.mxu0 0
        %1694 = vmatprep.subr.bf16.mxu0 0
        %1695 = vmatpush1.bf16.msra.mxu0 0
        %1696 = vmatprep.subr.bf16.mxu0 0
        %1697 = vmatpush1.bf16.msra.mxu0 0
        %1698 = vmatprep.subr.bf16.mxu0 0
        %1699 = vmatpush1.bf16.msra.mxu0 0
        %1700 = vmatprep.subr.bf16.mxu0 0
        %1701 = vmatpush1.bf16.msra.mxu0 0
        %1702 = vmatprep.subr.bf16.mxu0 0
        %1703 = vmatpush1.bf16.msra.mxu0 0
        %1704 = vmatprep.subr.bf16.mxu0 0
        %1705 = vmatpush1.bf16.msra.mxu0 0
        %1706 = vmatprep.subr.bf16.mxu0 0
        %1707 = vmatpush1.bf16.msra.mxu0 0
        %1708 = vmatprep.subr.bf16.mxu0 0
        %1709 = vmatpush1.bf16.msra.mxu0 0
        %1710 = vmatprep.subr.bf16.mxu0 0
        %1711 = vmatpush1.bf16.msra.mxu0 0
        %1712 = vmatprep.subr.bf16.mxu0 0
        %1713 = vmatpush1.bf16.msra.mxu0 0
        %1714 = vmatprep.subr.bf16.mxu0 0
        %1715 = vmatpush1.bf16.msra.mxu0 0
        %1716 = vmatprep.subr.bf16.mxu0 0
        %1717 = vmatpush1.bf16.msra.mxu0 0
        %1718 = vmatprep.mubr.bf16.mxu0 0
        %1719 = vmatmul.mubr.bf16.gmra.mrb[0].mxu0 %v1684
        %v1720 = vpop.f32.mrb[0].mxu0
        %v1721 = vadd.f32 0.0, %v1720
        %v1722 = vpop.f32.mrb[0].mxu0
        %v1723 = vpop.f32.mrb[0].mxu0
        %v1724 = vadd.f32 0.0, %v1723
        %v1725 = vpop.f32.mrb[0].mxu0
        %1726 = vdwg.mxu0
        %v1727 = vpack.c.bf16 %v1680, %v1677
        %v1728 = vpack.c.bf16 %v1724, %v1721
        %v1729 = vld [vmem:[%s10] sm:$0xf]
        %v1730 = vld [vmem:[%s10 + $0x4] sm:$0xf]
        %v1731 = vld [vmem:[%s10 + $0x8] sm:$0xf]
        %v1732 = vld [vmem:[%s10 + $0xc] sm:$0xf]
        %v1733 = vld [vmem:[%s10 + $0x10] sm:$0xf]
        %v1734 = vld [vmem:[%s10 + $0x14] sm:$0xf]
        %v1735 = vld [vmem:[%s10 + $0x18] sm:$0xf]
        %v1736 = vld [vmem:[%s10 + $0x1c] sm:$0xf]
        %v1737 = vld [vmem:[%s10 + $0x20] sm:$0xf]
        %v1738 = vld [vmem:[%s10 + $0x24] sm:$0xf]
        %v1739 = vld [vmem:[%s10 + $0x28] sm:$0xf]
        %v1740 = vld [vmem:[%s10 + $0x2c] sm:$0xf]
        %v1741 = vld [vmem:[%s10 + $0x30] sm:$0xf]
        %v1742 = vld [vmem:[%s10 + $0x34] sm:$0xf]
        %v1743 = vld [vmem:[%s10 + $0x38] sm:$0xf]
        %v1744 = vld [vmem:[%s10 + $0x3c] sm:$0xf]
        %v1745 = vld [vmem:[%s11] sm:$0x1]
        %v1747 = vlaneseq
        %v1748 = vshrl.u32 %v1747, 7
        %v1749 = vsub.s32 0, %v1748
        %v1750 = vrot.slane %v1745, %v1749
        %v1768 = vunpack.c.l.b16 %v1729
        %v1769 = vunpack.c.l.b16 %v1730
        %v1770 = vunpack.c.l.b16 %v1731
        %v1771 = vunpack.c.l.b16 %v1732
        %v1772 = vunpack.c.l.b16 %v1733
        %v1773 = vunpack.c.l.b16 %v1734
        %v1774 = vunpack.c.l.b16 %v1735
        %v1775 = vunpack.c.l.b16 %v1736
        %v1776 = vunpack.c.l.b16 %v1737
        %v1777 = vunpack.c.l.b16 %v1738
        %v1778 = vunpack.c.l.b16 %v1739
        %v1779 = vunpack.c.l.b16 %v1740
        %v1780 = vunpack.c.l.b16 %v1741
        %v1781 = vunpack.c.l.b16 %v1742
        %v1782 = vunpack.c.l.b16 %v1743
        %v1783 = vunpack.c.l.b16 %v1744
        %v1784 = vpack.c.b16 %v1769, %v1768
        %v1785 = vpack.c.b16 %v1771, %v1770
        %v1786 = vpack.c.b16 %v1773, %v1772
        %v1787 = vpack.c.b16 %v1775, %v1774
        %v1788 = vpack.c.b16 %v1777, %v1776
        %v1789 = vpack.c.b16 %v1779, %v1778
        %v1790 = vpack.c.b16 %v1781, %v1780
        %v1791 = vpack.c.b16 %v1783, %v1782
        %1800 = vmatprep.subr.bf16.mxu0 0
        %1801 = vmatpush1.bf16.msra.mxu0 %v1784
        %1802 = vmatprep.subr.bf16.mxu0 0
        %1803 = vmatpush1.bf16.msra.mxu0 %v1785
        %1804 = vmatprep.subr.bf16.mxu0 0
        %1805 = vmatpush1.bf16.msra.mxu0 %v1786
        %1806 = vmatprep.subr.bf16.mxu0 0
        %1807 = vmatpush1.bf16.msra.mxu0 %v1787
        %1808 = vmatprep.subr.bf16.mxu0 0
        %1809 = vmatpush1.bf16.msra.mxu0 %v1788
        %1810 = vmatprep.subr.bf16.mxu0 0
        %1811 = vmatpush1.bf16.msra.mxu0 %v1789
        %1812 = vmatprep.subr.bf16.mxu0 0
        %1813 = vmatpush1.bf16.msra.mxu0 %v1790
        %1814 = vmatprep.subr.bf16.mxu0 0
        %1815 = vmatpush1.bf16.msra.mxu0 %v1791
        %1816 = vmatprep.subr.bf16.mxu0 0
        %1817 = vmatpush1.bf16.msra.mxu0 0
        %1818 = vmatprep.subr.bf16.mxu0 0
        %1819 = vmatpush1.bf16.msra.mxu0 0
        %1820 = vmatprep.subr.bf16.mxu0 0
        %1821 = vmatpush1.bf16.msra.mxu0 0
        %1822 = vmatprep.subr.bf16.mxu0 0
        %1823 = vmatpush1.bf16.msra.mxu0 0
        %1824 = vmatprep.subr.bf16.mxu0 0
        %1825 = vmatpush1.bf16.msra.mxu0 0
        %1826 = vmatprep.subr.bf16.mxu0 0
        %1827 = vmatpush1.bf16.msra.mxu0 0
        %1828 = vmatprep.subr.bf16.mxu0 0
        %1829 = vmatpush1.bf16.msra.mxu0 0
        %1830 = vmatprep.subr.bf16.mxu0 0
        %1831 = vmatpush1.bf16.msra.mxu0 0
        %1832 = vmatprep.mubr.bf16.mxu0 0
        %1833 = vmatmul.mubr.bf16.gmra.mrb[0].mxu0 %v1727
        %v1834 = vpop.f32.mrb[0].mxu0
        %v1835 = vadd.f32 %v1750, %v1834
        %v1836 = vpop.f32.mrb[0].mxu0
        %v1837 = vpop.f32.mrb[0].mxu0
        %v1838 = vadd.f32 %v1750, %v1837
        %v1839 = vpop.f32.mrb[0].mxu0
        %1840 = vmatprep.mubr.bf16.mxu0 0
        %1841 = vmatmul.mubr.bf16.gmra.mrb[0].mxu0 %v1728
        %v1842 = vpop.f32.mrb[0].mxu0
        %v1843 = vadd.f32 %v1750, %v1842
        %v1844 = vpop.f32.mrb[0].mxu0
        %v1845 = vpop.f32.mrb[0].mxu0
        %v1846 = vadd.f32 %v1750, %v1845
        %v1847 = vpop.f32.mrb[0].mxu0
        %1848 = vdwg.mxu0
        %v1849 = vmax.f32 %v1835, 0.0
        %v1850 = vmax.f32 %v1838, 0.0
        %v1851 = vmax.f32 %v1843, 0.0
        %v1852 = vmax.f32 %v1846, 0.0
        %v1853 = vpack.c.bf16 %v1850, %v1849
        %v1854 = vpack.c.bf16 %v1852, %v1851
        %1855 = vmatprep.subr.bf16.mxu0 0
        %1856 = vmatpush1.bf16.msra.mxu0 %v1853
        %1857 = vmatprep.subr.bf16.mxu0 0
        %1858 = vmatpush1.bf16.msra.mxu0 0
        %1859 = vmatprep.subr.bf16.mxu0 0
        %1860 = vmatpush1.bf16.msra.mxu0 0
        %1861 = vmatprep.subr.bf16.mxu0 0
        %1862 = vmatpush1.bf16.msra.mxu0 0
        %1863 = vmatprep.subr.bf16.mxu0 0
        %1864 = vmatpush1.bf16.msra.mxu0 0
        %1865 = vmatprep.subr.bf16.mxu0 0
        %1866 = vmatpush1.bf16.msra.mxu0 0
        %1867 = vmatprep.subr.bf16.mxu0 0
        %1868 = vmatpush1.bf16.msra.mxu0 0
        %1869 = vmatprep.subr.bf16.mxu0 0
        %1870 = vmatpush1.bf16.msra.mxu0 0
        %1871 = vmatprep.subr.bf16.mxu0 0
        %1872 = vmatpush1.bf16.msra.mxu0 0
        %1873 = vmatprep.subr.bf16.mxu0 0
        %1874 = vmatpush1.bf16.msra.mxu0 0
        %1875 = vmatprep.subr.bf16.mxu0 0
        %1876 = vmatpush1.bf16.msra.mxu0 0
        %1877 = vmatprep.subr.bf16.mxu0 0
        %1878 = vmatpush1.bf16.msra.mxu0 0
        %1879 = vmatprep.subr.bf16.mxu0 0
        %1880 = vmatpush1.bf16.msra.mxu0 0
        %1881 = vmatprep.subr.bf16.mxu0 0
        %1882 = vmatpush1.bf16.msra.mxu0 0
        %1883 = vmatprep.subr.bf16.mxu0 0
        %1884 = vmatpush1.bf16.msra.mxu0 0
        %1885 = vmatprep.subr.bf16.mxu0 0
        %1886 = vmatpush1.bf16.msra.mxu0 0
        %1887 = vmatprep.mubr.bf16.mxu0 0
        %1888 = vmatmul.mubr.bf16.gmra.mrb[0].mxu0 %v1640
        %v1889 = vpop.f32.mrb[0].mxu0
        %v1890 = vadd.f32 0.0, %v1889
        %v1891 = vpop.f32.mrb[0].mxu0
        %v1892 = vpop.f32.mrb[0].mxu0
        %v1893 = vadd.f32 0.0, %v1892
        %v1894 = vpop.f32.mrb[0].mxu0
        %1895 = vdwg.mxu0
        %1896 = vmatprep.subr.bf16.mxu0 0
        %1897 = vmatpush1.bf16.msra.mxu0 %v1854
        %1898 = vmatprep.subr.bf16.mxu0 0
        %1899 = vmatpush1.bf16.msra.mxu0 0
        %1900 = vmatprep.subr.bf16.mxu0 0
        %1901 = vmatpush1.bf16.msra.mxu0 0
        %1902 = vmatprep.subr.bf16.mxu0 0
        %1903 = vmatpush1.bf16.msra.mxu0 0
        %1904 = vmatprep.subr.bf16.mxu0 0
        %1905 = vmatpush1.bf16.msra.mxu0 0
        %1906 = vmatprep.subr.bf16.mxu0 0
        %1907 = vmatpush1.bf16.msra.mxu0 0
        %1908 = vmatprep.subr.bf16.mxu0 0
        %1909 = vmatpush1.bf16.msra.mxu0 0
        %1910 = vmatprep.subr.bf16.mxu0 0
        %1911 = vmatpush1.bf16.msra.mxu0 0
        %1912 = vmatprep.subr.bf16.mxu0 0
        %1913 = vmatpush1.bf16.msra.mxu0 0
        %1914 = vmatprep.subr.bf16.mxu0 0
        %1915 = vmatpush1.bf16.msra.mxu0 0
        %1916 = vmatprep.subr.bf16.mxu0 0
        %1917 = vmatpush1.bf16.msra.mxu0 0
        %1918 = vmatprep.subr.bf16.mxu0 0
        %1919 = vmatpush1.bf16.msra.mxu0 0
        %1920 = vmatprep.subr.bf16.mxu0 0
        %1921 = vmatpush1.bf16.msra.mxu0 0
        %1922 = vmatprep.subr.bf16.mxu0 0
        %1923 = vmatpush1.bf16.msra.mxu0 0
        %1924 = vmatprep.subr.bf16.mxu0 0
        %1925 = vmatpush1.bf16.msra.mxu0 0
        %1926 = vmatprep.subr.bf16.mxu0 0
        %1927 = vmatpush1.bf16.msra.mxu0 0
        %1928 = vmatprep.mubr.bf16.mxu0 0
        %1929 = vmatmul.mubr.bf16.gmra.mrb[0].mxu0 %v1684
        %v1930 = vpop.f32.mrb[0].mxu0
        %v1931 = vadd.f32 0.0, %v1930
        %v1932 = vpop.f32.mrb[0].mxu0
        %v1933 = vpop.f32.mrb[0].mxu0
        %v1934 = vadd.f32 0.0, %v1933
        %v1935 = vpop.f32.mrb[0].mxu0
        %1936 = vdwg.mxu0
        %v1937 = vpack.c.bf16 %v1893, %v1890
        %v1938 = vpack.c.bf16 %v1934, %v1931
        %s1939 = scalar_lea.vmem %s10, 64
        %v1940 = vld [vmem:[%s1939] sm:$0xf]
        %v1941 = vld [vmem:[%s1939 + $0x4] sm:$0xf]
        %v1942 = vld [vmem:[%s1939 + $0x8] sm:$0xf]
        %v1943 = vld [vmem:[%s1939 + $0xc] sm:$0xf]
        %v1944 = vld [vmem:[%s1939 + $0x10] sm:$0xf]
        %v1945 = vld [vmem:[%s1939 + $0x14] sm:$0xf]
        %v1946 = vld [vmem:[%s1939 + $0x18] sm:$0xf]
        %v1947 = vld [vmem:[%s1939 + $0x1c] sm:$0xf]
        %v1948 = vld [vmem:[%s1939 + $0x20] sm:$0xf]
        %v1949 = vld [vmem:[%s1939 + $0x24] sm:$0xf]
        %v1950 = vld [vmem:[%s1939 + $0x28] sm:$0xf]
        %v1951 = vld [vmem:[%s1939 + $0x2c] sm:$0xf]
        %v1952 = vld [vmem:[%s1939 + $0x30] sm:$0xf]
        %v1953 = vld [vmem:[%s1939 + $0x34] sm:$0xf]
        %v1954 = vld [vmem:[%s1939 + $0x38] sm:$0xf]
        %v1955 = vld [vmem:[%s1939 + $0x3c] sm:$0xf]
        %s1956 = scalar_lea.vmem %s11, 1
        %v1957 = vld [vmem:[%s1956] sm:$0x1]
        %v1959 = vlaneseq
        %v1960 = vshrl.u32 %v1959, 7
        %v1961 = vsub.s32 0, %v1960
        %v1962 = vrot.slane %v1957, %v1961
        %v1980 = vunpack.c.l.b16 %v1940
        %v1981 = vunpack.c.l.b16 %v1941
        %v1982 = vunpack.c.l.b16 %v1942
        %v1983 = vunpack.c.l.b16 %v1943
        %v1984 = vunpack.c.l.b16 %v1944
        %v1985 = vunpack.c.l.b16 %v1945
        %v1986 = vunpack.c.l.b16 %v1946
        %v1987 = vunpack.c.l.b16 %v1947
        %v1988 = vunpack.c.l.b16 %v1948
        %v1989 = vunpack.c.l.b16 %v1949
        %v1990 = vunpack.c.l.b16 %v1950
        %v1991 = vunpack.c.l.b16 %v1951
        %v1992 = vunpack.c.l.b16 %v1952
        %v1993 = vunpack.c.l.b16 %v1953
        %v1994 = vunpack.c.l.b16 %v1954
        %v1995 = vunpack.c.l.b16 %v1955
        %v1996 = vpack.c.b16 %v1981, %v1980
        %v1997 = vpack.c.b16 %v1983, %v1982
        %v1998 = vpack.c.b16 %v1985, %v1984
        %v1999 = vpack.c.b16 %v1987, %v1986
        %v2000 = vpack.c.b16 %v1989, %v1988
        %v2001 = vpack.c.b16 %v1991, %v1990
        %v2002 = vpack.c.b16 %v1993, %v1992
        %v2003 = vpack.c.b16 %v1995, %v1994
        %2012 = vmatprep.subr.bf16.mxu0 0
        %2013 = vmatpush1.bf16.msra.mxu0 %v1996
        %2014 = vmatprep.subr.bf16.mxu0 0
        %2015 = vmatpush1.bf16.msra.mxu0 %v1997
        %2016 = vmatprep.subr.bf16.mxu0 0
        %2017 = vmatpush1.bf16.msra.mxu0 %v1998
        %2018 = vmatprep.subr.bf16.mxu0 0
        %2019 = vmatpush1.bf16.msra.mxu0 %v1999
        %2020 = vmatprep.subr.bf16.mxu0 0
        %2021 = vmatpush1.bf16.msra.mxu0 %v2000
        %2022 = vmatprep.subr.bf16.mxu0 0
        %2023 = vmatpush1.bf16.msra.mxu0 %v2001
        %2024 = vmatprep.subr.bf16.mxu0 0
        %2025 = vmatpush1.bf16.msra.mxu0 %v2002
        %2026 = vmatprep.subr.bf16.mxu0 0
        %2027 = vmatpush1.bf16.msra.mxu0 %v2003
        %2028 = vmatprep.subr.bf16.mxu0 0
        %2029 = vmatpush1.bf16.msra.mxu0 0
        %2030 = vmatprep.subr.bf16.mxu0 0
        %2031 = vmatpush1.bf16.msra.mxu0 0
        %2032 = vmatprep.subr.bf16.mxu0 0
        %2033 = vmatpush1.bf16.msra.mxu0 0
        %2034 = vmatprep.subr.bf16.mxu0 0
        %2035 = vmatpush1.bf16.msra.mxu0 0
        %2036 = vmatprep.subr.bf16.mxu0 0
        %2037 = vmatpush1.bf16.msra.mxu0 0
        %2038 = vmatprep.subr.bf16.mxu0 0
        %2039 = vmatpush1.bf16.msra.mxu0 0
        %2040 = vmatprep.subr.bf16.mxu0 0
        %2041 = vmatpush1.bf16.msra.mxu0 0
        %2042 = vmatprep.subr.bf16.mxu0 0
        %2043 = vmatpush1.bf16.msra.mxu0 0
        %2044 = vmatprep.mubr.bf16.mxu0 0
        %2045 = vmatmul.mubr.bf16.gmra.mrb[0].mxu0 %v1937
        %v2046 = vpop.f32.mrb[0].mxu0
        %v2047 = vadd.f32 %v1962, %v2046
        %v2048 = vpop.f32.mrb[0].mxu0
        %v2049 = vpop.f32.mrb[0].mxu0
        %v2050 = vadd.f32 %v1962, %v2049
        %v2051 = vpop.f32.mrb[0].mxu0
        %2052 = vmatprep.mubr.bf16.mxu0 0
        %2053 = vmatmul.mubr.bf16.gmra.mrb[0].mxu0 %v1938
        %v2054 = vpop.f32.mrb[0].mxu0
        %v2055 = vadd.f32 %v1962, %v2054
        %v2056 = vpop.f32.mrb[0].mxu0
        %v2057 = vpop.f32.mrb[0].mxu0
        %v2058 = vadd.f32 %v1962, %v2057
        %v2059 = vpop.f32.mrb[0].mxu0
        %2060 = vdwg.mxu0
        %v2061 = vmax.f32 %v2047, 0.0
        %v2062 = vmax.f32 %v2050, 0.0
        %v2063 = vmax.f32 %v2055, 0.0
        %v2064 = vmax.f32 %v2058, 0.0
        %v2065 = vpack.c.bf16 %v1636, %v1635
        %v2066 = vpack.c.bf16 %v1638, %v1637
        %v2067 = vld [vmem:[%s12] sm:$0xf]
        %v2068 = vld [vmem:[%s12 + $0x4] sm:$0xf]
        %v2069 = vld [vmem:[%s12 + $0x8] sm:$0xf]
        %v2070 = vld [vmem:[%s12 + $0xc] sm:$0xf]
        %v2071 = vld [vmem:[%s12 + $0x10] sm:$0xf]
        %v2072 = vld [vmem:[%s12 + $0x14] sm:$0xf]
        %v2073 = vld [vmem:[%s12 + $0x18] sm:$0xf]
        %v2074 = vld [vmem:[%s12 + $0x1c] sm:$0xf]
        %v2075 = vld [vmem:[%s12 + $0x20] sm:$0xf]
        %v2076 = vld [vmem:[%s12 + $0x24] sm:$0xf]
        %v2077 = vld [vmem:[%s12 + $0x28] sm:$0xf]
        %v2078 = vld [vmem:[%s12 + $0x2c] sm:$0xf]
        %v2079 = vld [vmem:[%s12 + $0x30] sm:$0xf]
        %v2080 = vld [vmem:[%s12 + $0x34] sm:$0xf]
        %v2081 = vld [vmem:[%s12 + $0x38] sm:$0xf]
        %v2082 = vld [vmem:[%s12 + $0x3c] sm:$0xf]
        %v2083 = vld [vmem:[%s13] sm:$0x1]
        %v2085 = vlaneseq
        %v2086 = vshrl.u32 %v2085, 7
        %v2087 = vsub.s32 0, %v2086
        %v2088 = vrot.slane %v2083, %v2087
        %v2106 = vunpack.c.l.b16 %v2067
        %v2107 = vunpack.c.l.b16 %v2068
        %v2108 = vunpack.c.l.b16 %v2069
        %v2109 = vunpack.c.l.b16 %v2070
        %v2110 = vunpack.c.l.b16 %v2071
        %v2111 = vunpack.c.l.b16 %v2072
        %v2112 = vunpack.c.l.b16 %v2073
        %v2113 = vunpack.c.l.b16 %v2074
        %v2114 = vunpack.c.l.b16 %v2075
        %v2115 = vunpack.c.l.b16 %v2076
        %v2116 = vunpack.c.l.b16 %v2077
        %v2117 = vunpack.c.l.b16 %v2078
        %v2118 = vunpack.c.l.b16 %v2079
        %v2119 = vunpack.c.l.b16 %v2080
        %v2120 = vunpack.c.l.b16 %v2081
        %v2121 = vunpack.c.l.b16 %v2082
        %v2122 = vpack.c.b16 %v2107, %v2106
        %v2123 = vpack.c.b16 %v2109, %v2108
        %v2124 = vpack.c.b16 %v2111, %v2110
        %v2125 = vpack.c.b16 %v2113, %v2112
        %v2126 = vpack.c.b16 %v2115, %v2114
        %v2127 = vpack.c.b16 %v2117, %v2116
        %v2128 = vpack.c.b16 %v2119, %v2118
        %v2129 = vpack.c.b16 %v2121, %v2120
        %2138 = vmatprep.subr.bf16.mxu0 0
        %2139 = vmatpush1.bf16.msra.mxu0 %v2122
        %2140 = vmatprep.subr.bf16.mxu0 0
        %2141 = vmatpush1.bf16.msra.mxu0 %v2123
        %2142 = vmatprep.subr.bf16.mxu0 0
        %2143 = vmatpush1.bf16.msra.mxu0 %v2124
        %2144 = vmatprep.subr.bf16.mxu0 0
        %2145 = vmatpush1.bf16.msra.mxu0 %v2125
        %2146 = vmatprep.subr.bf16.mxu0 0
        %2147 = vmatpush1.bf16.msra.mxu0 %v2126
        %2148 = vmatprep.subr.bf16.mxu0 0
        %2149 = vmatpush1.bf16.msra.mxu0 %v2127
        %2150 = vmatprep.subr.bf16.mxu0 0
        %2151 = vmatpush1.bf16.msra.mxu0 %v2128
        %2152 = vmatprep.subr.bf16.mxu0 0
        %2153 = vmatpush1.bf16.msra.mxu0 %v2129
        %2154 = vmatprep.subr.bf16.mxu0 0
        %2155 = vmatpush1.bf16.msra.mxu0 0
        %2156 = vmatprep.subr.bf16.mxu0 0
        %2157 = vmatpush1.bf16.msra.mxu0 0
        %2158 = vmatprep.subr.bf16.mxu0 0
        %2159 = vmatpush1.bf16.msra.mxu0 0
        %2160 = vmatprep.subr.bf16.mxu0 0
        %2161 = vmatpush1.bf16.msra.mxu0 0
        %2162 = vmatprep.subr.bf16.mxu0 0
        %2163 = vmatpush1.bf16.msra.mxu0 0
        %2164 = vmatprep.subr.bf16.mxu0 0
        %2165 = vmatpush1.bf16.msra.mxu0 0
        %2166 = vmatprep.subr.bf16.mxu0 0
        %2167 = vmatpush1.bf16.msra.mxu0 0
        %2168 = vmatprep.subr.bf16.mxu0 0
        %2169 = vmatpush1.bf16.msra.mxu0 0
        %2170 = vmatprep.mubr.bf16.mxu0 0
        %2171 = vmatmul.mubr.bf16.gmra.mrb[0].mxu0 %v2065
        %v2172 = vpop.f32.mrb[0].mxu0
        %v2173 = vadd.f32 %v2088, %v2172
        %v2174 = vpop.f32.mrb[0].mxu0
        %v2175 = vpop.f32.mrb[0].mxu0
        %v2176 = vadd.f32 %v2088, %v2175
        %v2177 = vpop.f32.mrb[0].mxu0
        %2178 = vmatprep.mubr.bf16.mxu0 0
        %2179 = vmatmul.mubr.bf16.gmra.mrb[0].mxu0 %v2066
        %v2180 = vpop.f32.mrb[0].mxu0
        %v2181 = vadd.f32 %v2088, %v2180
        %v2182 = vpop.f32.mrb[0].mxu0
        %v2183 = vpop.f32.mrb[0].mxu0
        %v2184 = vadd.f32 %v2088, %v2183
        %v2185 = vpop.f32.mrb[0].mxu0
        %2186 = vdwg.mxu0
        %v2187 = vmax.f32 %v2173, 0.0
        %v2188 = vmax.f32 %v2176, 0.0
        %v2189 = vmax.f32 %v2181, 0.0
        %v2190 = vmax.f32 %v2184, 0.0
        %2191 = vst [vmem:[%s598] sm:$0xff] %v2187
        %2192 = vst [vmem:[%s598 + $0x8] sm:$0xff] %v2188
        %2193 = vst [vmem:[%s598 + $0x10] sm:$0xff] %v2189
        %2194 = vst [vmem:[%s598 + $0x18] sm:$0xff] %v2190
        %v2195 = vpack.c.bf16 %v2062, %v2061
        %v2196 = vpack.c.bf16 %v2064, %v2063
        %v2197 = vld [vmem:[%s14] sm:$0xf]
        %v2198 = vld [vmem:[%s14 + $0x4] sm:$0xf]
        %v2199 = vld [vmem:[%s14 + $0x8] sm:$0xf]
        %v2200 = vld [vmem:[%s14 + $0xc] sm:$0xf]
        %v2201 = vld [vmem:[%s14 + $0x10] sm:$0xf]
        %v2202 = vld [vmem:[%s14 + $0x14] sm:$0xf]
        %v2203 = vld [vmem:[%s14 + $0x18] sm:$0xf]
        %v2204 = vld [vmem:[%s14 + $0x1c] sm:$0xf]
        %v2205 = vld [vmem:[%s14 + $0x20] sm:$0xf]
        %v2206 = vld [vmem:[%s14 + $0x24] sm:$0xf]
        %v2207 = vld [vmem:[%s14 + $0x28] sm:$0xf]
        %v2208 = vld [vmem:[%s14 + $0x2c] sm:$0xf]
        %v2209 = vld [vmem:[%s14 + $0x30] sm:$0xf]
        %v2210 = vld [vmem:[%s14 + $0x34] sm:$0xf]
        %v2211 = vld [vmem:[%s14 + $0x38] sm:$0xf]
        %v2212 = vld [vmem:[%s14 + $0x3c] sm:$0xf]
        %v2213 = vld [vmem:[%s15] sm:$0x1]
        %v2215 = vlaneseq
        %v2216 = vshrl.u32 %v2215, 7
        %v2217 = vsub.s32 0, %v2216
        %v2218 = vrot.slane %v2213, %v2217
        %v2236 = vunpack.c.l.b16 %v2197
        %v2237 = vunpack.c.l.b16 %v2198
        %v2238 = vunpack.c.l.b16 %v2199
        %v2239 = vunpack.c.l.b16 %v2200
        %v2240 = vunpack.c.l.b16 %v2201
        %v2241 = vunpack.c.l.b16 %v2202
        %v2242 = vunpack.c.l.b16 %v2203
        %v2243 = vunpack.c.l.b16 %v2204
        %v2244 = vunpack.c.l.b16 %v2205
        %v2245 = vunpack.c.l.b16 %v2206
        %v2246 = vunpack.c.l.b16 %v2207
        %v2247 = vunpack.c.l.b16 %v2208
        %v2248 = vunpack.c.l.b16 %v2209
        %v2249 = vunpack.c.l.b16 %v2210
        %v2250 = vunpack.c.l.b16 %v2211
        %v2251 = vunpack.c.l.b16 %v2212
        %v2252 = vpack.c.b16 %v2237, %v2236
        %v2253 = vpack.c.b16 %v2239, %v2238
        %v2254 = vpack.c.b16 %v2241, %v2240
        %v2255 = vpack.c.b16 %v2243, %v2242
        %v2256 = vpack.c.b16 %v2245, %v2244
        %v2257 = vpack.c.b16 %v2247, %v2246
        %v2258 = vpack.c.b16 %v2249, %v2248
        %v2259 = vpack.c.b16 %v2251, %v2250
        %2268 = vmatprep.subr.bf16.mxu0 0
        %2269 = vmatpush1.bf16.msra.mxu0 %v2252
        %2270 = vmatprep.subr.bf16.mxu0 0
        %2271 = vmatpush1.bf16.msra.mxu0 %v2253
        %2272 = vmatprep.subr.bf16.mxu0 0
        %2273 = vmatpush1.bf16.msra.mxu0 %v2254
        %2274 = vmatprep.subr.bf16.mxu0 0
        %2275 = vmatpush1.bf16.msra.mxu0 %v2255
        %2276 = vmatprep.subr.bf16.mxu0 0
        %2277 = vmatpush1.bf16.msra.mxu0 %v2256
        %2278 = vmatprep.subr.bf16.mxu0 0
        %2279 = vmatpush1.bf16.msra.mxu0 %v2257
        %2280 = vmatprep.subr.bf16.mxu0 0
        %2281 = vmatpush1.bf16.msra.mxu0 %v2258
        %2282 = vmatprep.subr.bf16.mxu0 0
        %2283 = vmatpush1.bf16.msra.mxu0 %v2259
        %2284 = vmatprep.subr.bf16.mxu0 0
        %2285 = vmatpush1.bf16.msra.mxu0 0
        %2286 = vmatprep.subr.bf16.mxu0 0
        %2287 = vmatpush1.bf16.msra.mxu0 0
        %2288 = vmatprep.subr.bf16.mxu0 0
        %2289 = vmatpush1.bf16.msra.mxu0 0
        %2290 = vmatprep.subr.bf16.mxu0 0
        %2291 = vmatpush1.bf16.msra.mxu0 0
        %2292 = vmatprep.subr.bf16.mxu0 0
        %2293 = vmatpush1.bf16.msra.mxu0 0
        %2294 = vmatprep.subr.bf16.mxu0 0
        %2295 = vmatpush1.bf16.msra.mxu0 0
        %2296 = vmatprep.subr.bf16.mxu0 0
        %2297 = vmatpush1.bf16.msra.mxu0 0
        %2298 = vmatprep.subr.bf16.mxu0 0
        %2299 = vmatpush1.bf16.msra.mxu0 0
        %2300 = vmatprep.mubr.bf16.mxu0 0
        %2301 = vmatmul.mubr.bf16.gmra.mrb[0].mxu0 %v2195
        %v2302 = vpop.f32.mrb[0].mxu0
        %v2303 = vadd.f32 %v2218, %v2302
        %v2304 = vpop.f32.mrb[0].mxu0
        %v2305 = vpop.f32.mrb[0].mxu0
        %v2306 = vadd.f32 %v2218, %v2305
        %v2307 = vpop.f32.mrb[0].mxu0
        %2308 = vmatprep.mubr.bf16.mxu0 0
        %2309 = vmatmul.mubr.bf16.gmra.mrb[0].mxu0 %v2196
        %v2310 = vpop.f32.mrb[0].mxu0
        %v2311 = vadd.f32 %v2218, %v2310
        %v2312 = vpop.f32.mrb[0].mxu0
        %v2313 = vpop.f32.mrb[0].mxu0
        %v2314 = vadd.f32 %v2218, %v2313
        %v2315 = vpop.f32.mrb[0].mxu0
        %2316 = vdwg.mxu0
        %v2317 = vmax.f32 %v2303, 0.0
        %v2318 = vmax.f32 %v2306, 0.0
        %v2319 = vmax.f32 %v2311, 0.0
        %v2320 = vmax.f32 %v2314, 0.0
        %2321 = vst [vmem:[%s605] sm:$0xff] %v2317
        %2322 = vst [vmem:[%s605 + $0x8] sm:$0xff] %v2318
        %2323 = vst [vmem:[%s605 + $0x10] sm:$0xff] %v2319
        %2324 = vst [vmem:[%s605 + $0x18] sm:$0xff] %v2320
        %s2325 = sand.u32 %s399, 1
        %s2326 = scalar_lea.sflag [#allocation3], %s2325
        %s2327 = sand.u32 %s399, 1
        %s2328 = smul.addr %s2327, 32
        %s2329 = scalar_lea.vmem [#allocation2], %s2328
        %s2330 = sand.u32 %s425, 1
        %s2331 = scalar_lea.sflag [#allocation5], %s2330
        %s2332 = sand.u32 %s425, 1
        %s2333 = smul.addr %s2332, 32
        %s2334 = scalar_lea.vmem [#allocation4], %s2333
        // Predicated region
        $region85: #{dual_channel_encoder_forward.1} parent=83 // pred_check
          %p2335 = pneg %p409
        $region86: #{dual_channel_encoder_forward.1} parent=83 // pred_check_branch
          %2337 = sbr.rel (%p2335) target = $region88
        $region87: #{dual_channel_encoder_forward.1} parent=83 // pred_region
          %s2338 = smul.u32 2, %s35
          %s2340 = ssub.s32 512, 512
          %2341 = vsyncadd %s2326, %s2340
          %s2342 = smul.addr %s2338, 2
          %s2343 = smul.addr %s2342, 128
          %s2344 = scalar_lea.hbm %s16, %s2343
          %s2345 = sshll.u32 %s2329, 4
          %s2346 = int_to_ptr.vmem [resolvable:$true] %s2345
          %2351 = dma.vmem_to_hbm [thread:$0]  %s2346, 512, %s2344, %s2326, 128, 128, 8
        $region88: #{dual_channel_encoder_forward.1} parent=83 // pred_fallthru
          _
        // Predicated region
        $region89: #{dual_channel_encoder_forward.1} parent=83 // pred_check
          %p2352 = pneg %p435
        $region90: #{dual_channel_encoder_forward.1} parent=83 // pred_check_branch
          %2354 = sbr.rel (%p2352) target = $region92
        $region91: #{dual_channel_encoder_forward.1} parent=83 // pred_region
          %s2355 = smul.u32 2, %s35
          %s2357 = ssub.s32 512, 512
          %2358 = vsyncadd %s2331, %s2357
          %s2359 = smul.addr %s2355, 2
          %s2360 = smul.addr %s2359, 128
          %s2361 = scalar_lea.hbm %s17, %s2360
          %s2362 = sshll.u32 %s2334, 4
          %s2363 = int_to_ptr.vmem [resolvable:$true] %s2362
          %2368 = dma.vmem_to_hbm [thread:$0]  %s2363, 512, %s2361, %s2331, 128, 128, 8
        $region92: #{dual_channel_encoder_forward.1} parent=83 // pred_fallthru
          _
      $region84: #{dual_channel_encoder_forward.1} parent=5 // pred_fallthru
        _
      %p2369 = scmp.le.s32.totalorder 2, %s30
      // Predicated region
      $region93: #{dual_channel_encoder_forward.1} parent=5 // pred_check
        %p2370 = pneg %p2369
      $region94: #{dual_channel_encoder_forward.1} parent=5 // pred_check_branch
        %2372 = sbr.rel (%p2370) target = $region96
      $region95: #{dual_channel_encoder_forward.1} parent=5 // pred_region
        %s2373 = ssub.s32 %s30, 2
        // Predicated region
        $region97: #{dual_channel_encoder_forward.1} parent=95 // pred_check
          %p2374 = pneg %p415
        $region98: #{dual_channel_encoder_forward.1} parent=95 // pred_check_branch
          %2376 = sbr.rel (%p2374) target = $region100
        $region99: #{dual_channel_encoder_forward.1} parent=95 // pred_region
          %s2377 = sand.u32 %s400, 1
          %s2378 = scalar_lea.sflag [#allocation3], %s2377
          %s2379 = sand.u32 %s400, 1
          %s2380 = smul.addr %s2379, 32
          %s2381 = scalar_lea.vmem [#allocation2], %s2380
          %2382 = dma.done %s2378, 512
        $region100: #{dual_channel_encoder_forward.1} parent=95 // pred_fallthru
          _
        // Predicated region
        $region101: #{dual_channel_encoder_forward.1} parent=95 // pred_check
          %p2383 = pneg %p441
        $region102: #{dual_channel_encoder_forward.1} parent=95 // pred_check_branch
          %2385 = sbr.rel (%p2383) target = $region104
        $region103: #{dual_channel_encoder_forward.1} parent=95 // pred_region
          %s2386 = sand.u32 %s426, 1
          %s2387 = scalar_lea.sflag [#allocation5], %s2386
          %s2388 = sand.u32 %s426, 1
          %s2389 = smul.addr %s2388, 32
          %s2390 = scalar_lea.vmem [#allocation4], %s2389
          %2391 = dma.done %s2387, 512
        $region104: #{dual_channel_encoder_forward.1} parent=95 // pred_fallthru
          _
      $region96: #{dual_channel_encoder_forward.1} parent=5 // pred_fallthru
        _
    $region6: #{dual_channel_encoder_forward.1} parent=1 // loop_footer
      %s34 = sadd.s32 1, %s30
    $region7: #{dual_channel_encoder_forward.1} parent=1 // loop_footer_branch
      %29 = sbr.rel target = $region3
    $region8: #{dual_channel_encoder_forward.1} parent=1 // loop_exit
      _
    %2392 = vsyncpa [#allocation3], 1
    %s2393 = scalar_lea.sflag [#allocation3], 1
    %2394 = vsyncpa %s2393, 1
    %2395 = vsyncpa [#allocation5], 1
    %s2396 = scalar_lea.sflag [#allocation5], 1
    %2397 = vsyncpa %s2396, 1

</llo_original>
